<compile_context>
chip_gen: v7x
topology: tpu7x:2x2x1
jax: 0.10.0
libtpu: 0.0.40
codegen_flags: <defaults>
</compile_context>

<pallas_src>
import functools

import jax
import jax.numpy as jnp
from jax.experimental import pallas as pl
from jax.experimental.pallas import tpu as pltpu


# ----------------------------------------------------------------------------
# Pallas kernel: one row-tile of the fused 7-linear chain
# ----------------------------------------------------------------------------

def _recon_kernel(x_ref,
                  w1_ref, b1_ref, w2_ref, b2_ref, w3_ref, b3_ref,
                  w4_ref, b4_ref, w5_ref, b5_ref, w6_ref, b6_ref,
                  w7_ref, b7_ref,
                  x1_ref, x2_ref):
    """x_ref: (TM, kp). Weights (in, out); biases (1, out).

    Writes x1_ref: (TM, hidden) and x2_ref: (TM, 480) for this row tile.
    """
    h = x_ref[...]
    h = jnp.dot(h, w1_ref[...], preferred_element_type=jnp.float32) + b1_ref[...]
    h = jnp.dot(h, w2_ref[...], preferred_element_type=jnp.float32) + b2_ref[...]
    h = jnp.dot(h, w3_ref[...], preferred_element_type=jnp.float32) + b3_ref[...]
    h = jnp.dot(h, w4_ref[...], preferred_element_type=jnp.float32) + b4_ref[...]
    h = jnp.dot(h, w5_ref[...], preferred_element_type=jnp.float32) + b5_ref[...]
    x1 = jnp.dot(h, w6_ref[...], preferred_element_type=jnp.float32) + b6_ref[...]
    x1_ref[...] = x1
    x2_ref[...] = jnp.dot(x1, w7_ref[...],
                          preferred_element_type=jnp.float32) + b7_ref[...]


# ----------------------------------------------------------------------------
# Wrapper
# ----------------------------------------------------------------------------

def recon_detection_forward(params, inputs, *, tm=256):
    """inputs: (..., kp) float32 -> (x1: (..., hidden), x2: (..., 480))."""
    kp = inputs.shape[-1]
    lead = inputs.shape[:-1]
    x = inputs.reshape(-1, kp).astype(jnp.float32)
    n = x.shape[0]

    # Row tile: multiple of 8 (sublane), clamped to the (8-aligned) row count.
    n8 = ((n + 7) // 8) * 8
    tm = max(8, min(int(tm), n8))
    n_pad = ((n8 + tm - 1) // tm) * tm
    if n_pad != n:
        x = jnp.pad(x, ((0, n_pad - n), (0, 0)))

    hidden = params["w6"].shape[1]
    out_dim = params["w7"].shape[1]

    def _rep(arr):  # weight / bias block: full array, resident across grid steps
        return pl.BlockSpec(arr.shape, lambda i: (0, 0))

    weight_args = []
    in_specs = [pl.BlockSpec((tm, kp), lambda i: (i, 0))]
    layer_dims = []
    for idx in range(1, 8):
        w = params[f"w{idx}"]
        b = params[f"b{idx}"]
        layer_dims.append(w.shape)
        weight_args += [w, b]
        in_specs += [_rep(w), _rep(b)]

    # Advisory cost estimate for XLA's scheduler.
    flops = 2 * n_pad * sum(fi * fo for fi, fo in layer_dims)
    param_bytes = sum(int(a.size) * a.dtype.itemsize for a in weight_args)
    bytes_accessed = (n_pad * kp + n_pad * hidden + n_pad * out_dim) * 4 + param_bytes
    cost = pl.CostEstimate(flops=flops, transcendentals=0,
                           bytes_accessed=bytes_accessed)

    x1, x2 = pl.pallas_call(
        _recon_kernel,
        out_shape=(jax.ShapeDtypeStruct((n_pad, hidden), jnp.float32),
                   jax.ShapeDtypeStruct((n_pad, out_dim), jnp.float32)),
        grid=(n_pad // tm,),
        in_specs=in_specs,
        out_specs=(pl.BlockSpec((tm, hidden), lambda i: (i, 0)),
                   pl.BlockSpec((tm, out_dim), lambda i: (i, 0))),
        compiler_params=pltpu.CompilerParams(
            dimension_semantics=("parallel",)),
        cost_estimate=cost,
    )(x, *weight_args)

    x1 = x1[:n].reshape(lead + (hidden,))
    x2 = x2[:n].reshape(lead + (out_dim,))
    return x1, x2


# ----------------------------------------------------------------------------
# Deterministic parameter init (PyTorch nn.Linear-style uniform bounds)
# ----------------------------------------------------------------------------

def init_recon_params(key, inp_channel, oup_channel):
    dims = [inp_channel, 32, 64, 128,
            oup_channel, oup_channel, oup_channel, 480]
    keys = jax.random.split(key, 2 * (len(dims) - 1))
    params = {}
    for i in range(len(dims) - 1):
        fan_in, fan_out = dims[i], dims[i + 1]
        bound = 1.0 / (fan_in ** 0.5)
        params[f"w{i + 1}"] = jax.random.uniform(
            keys[2 * i], (fan_in, fan_out), jnp.float32, -bound, bound)
        params[f"b{i + 1}"] = jax.random.uniform(
            keys[2 * i + 1], (1, fan_out), jnp.float32, -bound, bound)
    return params


# ----------------------------------------------------------------------------
# Main
# ----------------------------------------------------------------------------

if __name__ == "__main__":
    # Layer names in the module imply inp_channel=2 and hidden_dim=256.
    INP_CHANNEL, OUP_CHANNEL = 2, 256
    B, N_KP = 2, 64          # small: 128 flattened rows -> single row tile

    root = jax.random.PRNGKey(0)
    k_par, k_in = jax.random.split(root)
    params = init_recon_params(k_par, INP_CHANNEL, OUP_CHANNEL)
    inputs = jax.random.normal(k_in, (B, N_KP, INP_CHANNEL), jnp.float32)

    fwd = jax.jit(functools.partial(recon_detection_forward, tm=256))
    x1, x2 = fwd(params, inputs)
    x1 = jax.block_until_ready(x1)
    x2 = jax.block_until_ready(x2)

    assert x1.shape == (B, N_KP, OUP_CHANNEL), x1.shape
    assert x2.shape == (B, N_KP, 480), x2.shape

    # Pure-JAX reference for correctness.
    def ref(p, xin):
        h = xin
        for i in range(1, 6):
            h = h @ p[f"w{i}"] + p[f"b{i}"][0]
        r1 = h @ p["w6"] + p["b6"][0]
        r2 = r1 @ p["w7"] + p["b7"][0]
        return r1, r2

    r1, r2 = ref(params, inputs)
    assert bool(jnp.isfinite(x1).all()) and bool(jnp.isfinite(x2).all())
    assert bool(jnp.allclose(x1, r1, rtol=1e-3, atol=1e-3))
    assert bool(jnp.allclose(x2, r2, rtol=1e-3, atol=1e-3))
    print("KERNEL_OK")
</pallas_src>

<mosaic_0001>
module attributes {stable_mosaic.version = 11 : i64} {
  func.func @_recon_kernel(%arg0: i32, %arg1: memref<128x2xf32, #tpu.memory_space<vmem>>, %arg2: memref<2x32xf32, #tpu.memory_space<vmem>>, %arg3: memref<1x32xf32, #tpu.memory_space<vmem>>, %arg4: memref<32x64xf32, #tpu.memory_space<vmem>>, %arg5: memref<1x64xf32, #tpu.memory_space<vmem>>, %arg6: memref<64x128xf32, #tpu.memory_space<vmem>>, %arg7: memref<1x128xf32, #tpu.memory_space<vmem>>, %arg8: memref<128x256xf32, #tpu.memory_space<vmem>>, %arg9: memref<1x256xf32, #tpu.memory_space<vmem>>, %arg10: memref<256x256xf32, #tpu.memory_space<vmem>>, %arg11: memref<1x256xf32, #tpu.memory_space<vmem>>, %arg12: memref<256x256xf32, #tpu.memory_space<vmem>>, %arg13: memref<1x256xf32, #tpu.memory_space<vmem>>, %arg14: memref<256x480xf32, #tpu.memory_space<vmem>>, %arg15: memref<1x480xf32, #tpu.memory_space<vmem>>, %arg16: memref<128x256xf32, #tpu.memory_space<vmem>>, %arg17: memref<128x480xf32, #tpu.memory_space<vmem>>) attributes {dimension_semantics = [#tpu.dimension_semantics<parallel>], iteration_bounds = array<i64: 1>, scalar_prefetch = 0 : i64, scratch_operands = 0 : i64, tpu.core_type = #tpu.core_type<tc>, window_params = [{transform_indices = @transform_0, window_bounds = array<i64: 128, 2>}, {pipeline_mode = #tpu.pipeline_mode<synchronous>, transform_indices = @transform_1, window_bounds = array<i64: 2, 32>}, {pipeline_mode = #tpu.pipeline_mode<synchronous>, transform_indices = @transform_2, window_bounds = array<i64: 1, 32>}, {pipeline_mode = #tpu.pipeline_mode<synchronous>, transform_indices = @transform_3, window_bounds = array<i64: 32, 64>}, {pipeline_mode = #tpu.pipeline_mode<synchronous>, transform_indices = @transform_4, window_bounds = array<i64: 1, 64>}, {pipeline_mode = #tpu.pipeline_mode<synchronous>, transform_indices = @transform_5, window_bounds = array<i64: 64, 128>}, {pipeline_mode = #tpu.pipeline_mode<synchronous>, transform_indices = @transform_6, window_bounds = array<i64: 1, 128>}, {pipeline_mode = #tpu.pipeline_mode<synchronous>, transform_indices = @transform_7, window_bounds = array<i64: 128, 256>}, {pipeline_mode = #tpu.pipeline_mode<synchronous>, transform_indices = @transform_8, window_bounds = array<i64: 1, 256>}, {pipeline_mode = #tpu.pipeline_mode<synchronous>, transform_indices = @transform_9, window_bounds = array<i64: 256, 256>}, {pipeline_mode = #tpu.pipeline_mode<synchronous>, transform_indices = @transform_10, window_bounds = array<i64: 1, 256>}, {pipeline_mode = #tpu.pipeline_mode<synchronous>, transform_indices = @transform_11, window_bounds = array<i64: 256, 256>}, {pipeline_mode = #tpu.pipeline_mode<synchronous>, transform_indices = @transform_12, window_bounds = array<i64: 1, 256>}, {pipeline_mode = #tpu.pipeline_mode<synchronous>, transform_indices = @transform_13, window_bounds = array<i64: 256, 480>}, {pipeline_mode = #tpu.pipeline_mode<synchronous>, transform_indices = @transform_14, window_bounds = array<i64: 1, 480>}, {transform_indices = @transform_15, window_bounds = array<i64: 128, 256>}, {transform_indices = @transform_16, window_bounds = array<i64: 128, 480>}]} {
    %c0 = arith.constant 0 : index
    %c0_0 = arith.constant 0 : index
    %0 = vector.load %arg1[%c0, %c0_0] : memref<128x2xf32, #tpu.memory_space<vmem>>, vector<128x2xf32>
    %c0_1 = arith.constant 0 : index
    %c0_2 = arith.constant 0 : index
    %1 = vector.load %arg2[%c0_1, %c0_2] : memref<2x32xf32, #tpu.memory_space<vmem>>, vector<2x32xf32>
    %cst = arith.constant dense<0.000000e+00> : vector<128x32xf32>
    %2 = tpu.matmul %0, %1, %cst {dimension_numbers = #tpu.dot_dimension_numbers<[1], [0], [0], [1], [0, 0, 1, 1], [], []>} : vector<128x2xf32>, vector<2x32xf32>, vector<128x32xf32> -> vector<128x32xf32>
    %c0_3 = arith.constant 0 : index
    %c0_4 = arith.constant 0 : index
    %3 = vector.load %arg3[%c0_3, %c0_4] : memref<1x32xf32, #tpu.memory_space<vmem>>, vector<1x32xf32>
    %4 = vector.broadcast %3 : vector<1x32xf32> to vector<128x32xf32>
    %5 = arith.addf %2, %4 : vector<128x32xf32>
    %c0_5 = arith.constant 0 : index
    %c0_6 = arith.constant 0 : index
    %6 = vector.load %arg4[%c0_5, %c0_6] : memref<32x64xf32, #tpu.memory_space<vmem>>, vector<32x64xf32>
    %cst_7 = arith.constant dense<0.000000e+00> : vector<128x64xf32>
    %7 = tpu.matmul %5, %6, %cst_7 {dimension_numbers = #tpu.dot_dimension_numbers<[1], [0], [0], [1], [0, 0, 1, 1], [], []>} : vector<128x32xf32>, vector<32x64xf32>, vector<128x64xf32> -> vector<128x64xf32>
    %c0_8 = arith.constant 0 : index
    %c0_9 = arith.constant 0 : index
    %8 = vector.load %arg5[%c0_8, %c0_9] : memref<1x64xf32, #tpu.memory_space<vmem>>, vector<1x64xf32>
    %9 = vector.broadcast %8 : vector<1x64xf32> to vector<128x64xf32>
    %10 = arith.addf %7, %9 : vector<128x64xf32>
    %c0_10 = arith.constant 0 : index
    %c0_11 = arith.constant 0 : index
    %11 = vector.load %arg6[%c0_10, %c0_11] : memref<64x128xf32, #tpu.memory_space<vmem>>, vector<64x128xf32>
    %cst_12 = arith.constant dense<0.000000e+00> : vector<128x128xf32>
    %12 = tpu.matmul %10, %11, %cst_12 {dimension_numbers = #tpu.dot_dimension_numbers<[1], [0], [0], [1], [0, 0, 1, 1], [], []>} : vector<128x64xf32>, vector<64x128xf32>, vector<128x128xf32> -> vector<128x128xf32>
    %c0_13 = arith.constant 0 : index
    %c0_14 = arith.constant 0 : index
    %13 = vector.load %arg7[%c0_13, %c0_14] : memref<1x128xf32, #tpu.memory_space<vmem>>, vector<1x128xf32>
    %14 = vector.broadcast %13 : vector<1x128xf32> to vector<128x128xf32>
    %15 = arith.addf %12, %14 : vector<128x128xf32>
    %c0_15 = arith.constant 0 : index
    %c0_16 = arith.constant 0 : index
    %16 = vector.load %arg8[%c0_15, %c0_16] : memref<128x256xf32, #tpu.memory_space<vmem>>, vector<128x256xf32>
    %cst_17 = arith.constant dense<0.000000e+00> : vector<128x256xf32>
    %17 = tpu.matmul %15, %16, %cst_17 {dimension_numbers = #tpu.dot_dimension_numbers<[1], [0], [0], [1], [0, 0, 1, 1], [], []>} : vector<128x128xf32>, vector<128x256xf32>, vector<128x256xf32> -> vector<128x256xf32>
    %c0_18 = arith.constant 0 : index
    %c0_19 = arith.constant 0 : index
    %18 = vector.load %arg9[%c0_18, %c0_19] : memref<1x256xf32, #tpu.memory_space<vmem>>, vector<1x256xf32>
    %19 = vector.broadcast %18 : vector<1x256xf32> to vector<128x256xf32>
    %20 = arith.addf %17, %19 : vector<128x256xf32>
    %c0_20 = arith.constant 0 : index
    %c0_21 = arith.constant 0 : index
    %21 = vector.load %arg10[%c0_20, %c0_21] : memref<256x256xf32, #tpu.memory_space<vmem>>, vector<256x256xf32>
    %cst_22 = arith.constant dense<0.000000e+00> : vector<128x256xf32>
    %22 = tpu.matmul %20, %21, %cst_22 {dimension_numbers = #tpu.dot_dimension_numbers<[1], [0], [0], [1], [0, 0, 1, 1], [], []>} : vector<128x256xf32>, vector<256x256xf32>, vector<128x256xf32> -> vector<128x256xf32>
    %c0_23 = arith.constant 0 : index
    %c0_24 = arith.constant 0 : index
    %23 = vector.load %arg11[%c0_23, %c0_24] : memref<1x256xf32, #tpu.memory_space<vmem>>, vector<1x256xf32>
    %24 = vector.broadcast %23 : vector<1x256xf32> to vector<128x256xf32>
    %25 = arith.addf %22, %24 : vector<128x256xf32>
    %c0_25 = arith.constant 0 : index
    %c0_26 = arith.constant 0 : index
    %26 = vector.load %arg12[%c0_25, %c0_26] : memref<256x256xf32, #tpu.memory_space<vmem>>, vector<256x256xf32>
    %cst_27 = arith.constant dense<0.000000e+00> : vector<128x256xf32>
    %27 = tpu.matmul %25, %26, %cst_27 {dimension_numbers = #tpu.dot_dimension_numbers<[1], [0], [0], [1], [0, 0, 1, 1], [], []>} : vector<128x256xf32>, vector<256x256xf32>, vector<128x256xf32> -> vector<128x256xf32>
    %c0_28 = arith.constant 0 : index
    %c0_29 = arith.constant 0 : index
    %28 = vector.load %arg13[%c0_28, %c0_29] : memref<1x256xf32, #tpu.memory_space<vmem>>, vector<1x256xf32>
    %29 = vector.broadcast %28 : vector<1x256xf32> to vector<128x256xf32>
    %30 = arith.addf %27, %29 : vector<128x256xf32>
    %c0_30 = arith.constant 0 : index
    %c0_31 = arith.constant 0 : index
    %31 = vector.load %arg16[%c0_30, %c0_31] : memref<128x256xf32, #tpu.memory_space<vmem>>, vector<128x256xf32>
    tpu.vector_store %arg16[%c0_30, %c0_31], %30 {strides = array<i32>} : memref<128x256xf32, #tpu.memory_space<vmem>>, vector<128x256xf32>,
    %c0_32 = arith.constant 0 : index
    %c0_33 = arith.constant 0 : index
    %32 = vector.load %arg14[%c0_32, %c0_33] : memref<256x480xf32, #tpu.memory_space<vmem>>, vector<256x480xf32>
    %cst_34 = arith.constant dense<0.000000e+00> : vector<128x480xf32>
    %33 = tpu.matmul %30, %32, %cst_34 {dimension_numbers = #tpu.dot_dimension_numbers<[1], [0], [0], [1], [0, 0, 1, 1], [], []>} : vector<128x256xf32>, vector<256x480xf32>, vector<128x480xf32> -> vector<128x480xf32>
    %c0_35 = arith.constant 0 : index
    %c0_36 = arith.constant 0 : index
    %34 = vector.load %arg15[%c0_35, %c0_36] : memref<1x480xf32, #tpu.memory_space<vmem>>, vector<1x480xf32>
    %35 = vector.broadcast %34 : vector<1x480xf32> to vector<128x480xf32>
    %36 = arith.addf %33, %35 : vector<128x480xf32>
    %c0_37 = arith.constant 0 : index
    %c0_38 = arith.constant 0 : index
    %37 = vector.load %arg17[%c0_37, %c0_38] : memref<128x480xf32, #tpu.memory_space<vmem>>, vector<128x480xf32>
    tpu.vector_store %arg17[%c0_37, %c0_38], %36 {strides = array<i32>} : memref<128x480xf32, #tpu.memory_space<vmem>>, vector<128x480xf32>,
    return
  }
  func.func @transform_0(%arg0: i32) -> (i32, i32) {
    %c0_i32 = arith.constant 0 : i32
    %c0_i32_0 = arith.constant 0 : i32
    return %arg0, %c0_i32 : i32, i32
  }
  func.func @transform_1(%arg0: i32) -> (i32, i32) {
    %c0_i32 = arith.constant 0 : i32
    %c0_i32_0 = arith.constant 0 : i32
    %c0_i32_1 = arith.constant 0 : i32
    return %c0_i32, %c0_i32_0 : i32, i32
  }
  func.func @transform_2(%arg0: i32) -> (i32, i32) {
    %c0_i32 = arith.constant 0 : i32
    %c0_i32_0 = arith.constant 0 : i32
    %c0_i32_1 = arith.constant 0 : i32
    return %c0_i32, %c0_i32_0 : i32, i32
  }
  func.func @transform_3(%arg0: i32) -> (i32, i32) {
    %c0_i32 = arith.constant 0 : i32
    %c0_i32_0 = arith.constant 0 : i32
    %c0_i32_1 = arith.constant 0 : i32
    return %c0_i32, %c0_i32_0 : i32, i32
  }
  func.func @transform_4(%arg0: i32) -> (i32, i32) {
    %c0_i32 = arith.constant 0 : i32
    %c0_i32_0 = arith.constant 0 : i32
    %c0_i32_1 = arith.constant 0 : i32
    return %c0_i32, %c0_i32_0 : i32, i32
  }
  func.func @transform_5(%arg0: i32) -> (i32, i32) {
    %c0_i32 = arith.constant 0 : i32
    %c0_i32_0 = arith.constant 0 : i32
    %c0_i32_1 = arith.constant 0 : i32
    return %c0_i32, %c0_i32_0 : i32, i32
  }
  func.func @transform_6(%arg0: i32) -> (i32, i32) {
    %c0_i32 = arith.constant 0 : i32
    %c0_i32_0 = arith.constant 0 : i32
    %c0_i32_1 = arith.constant 0 : i32
    return %c0_i32, %c0_i32_0 : i32, i32
  }
  func.func @transform_7(%arg0: i32) -> (i32, i32) {
    %c0_i32 = arith.constant 0 : i32
    %c0_i32_0 = arith.constant 0 : i32
    %c0_i32_1 = arith.constant 0 : i32
    return %c0_i32, %c0_i32_0 : i32, i32
  }
  func.func @transform_8(%arg0: i32) -> (i32, i32) {
    %c0_i32 = arith.constant 0 : i32
    %c0_i32_0 = arith.constant 0 : i32
    %c0_i32_1 = arith.constant 0 : i32
    return %c0_i32, %c0_i32_0 : i32, i32
  }
  func.func @transform_9(%arg0: i32) -> (i32, i32) {
    %c0_i32 = arith.constant 0 : i32
    %c0_i32_0 = arith.constant 0 : i32
    %c0_i32_1 = arith.constant 0 : i32
    return %c0_i32, %c0_i32_0 : i32, i32
  }
  func.func @transform_10(%arg0: i32) -> (i32, i32) {
    %c0_i32 = arith.constant 0 : i32
    %c0_i32_0 = arith.constant 0 : i32
    %c0_i32_1 = arith.constant 0 : i32
    return %c0_i32, %c0_i32_0 : i32, i32
  }
  func.func @transform_11(%arg0: i32) -> (i32, i32) {
    %c0_i32 = arith.constant 0 : i32
    %c0_i32_0 = arith.constant 0 : i32
    %c0_i32_1 = arith.constant 0 : i32
    return %c0_i32, %c0_i32_0 : i32, i32
  }
  func.func @transform_12(%arg0: i32) -> (i32, i32) {
    %c0_i32 = arith.constant 0 : i32
    %c0_i32_0 = arith.constant 0 : i32
    %c0_i32_1 = arith.constant 0 : i32
    return %c0_i32, %c0_i32_0 : i32, i32
  }
  func.func @transform_13(%arg0: i32) -> (i32, i32) {
    %c0_i32 = arith.constant 0 : i32
    %c0_i32_0 = arith.constant 0 : i32
    %c0_i32_1 = arith.constant 0 : i32
    return %c0_i32, %c0_i32_0 : i32, i32
  }
  func.func @transform_14(%arg0: i32) -> (i32, i32) {
    %c0_i32 = arith.constant 0 : i32
    %c0_i32_0 = arith.constant 0 : i32
    %c0_i32_1 = arith.constant 0 : i32
    return %c0_i32, %c0_i32_0 : i32, i32
  }
  func.func @transform_15(%arg0: i32) -> (i32, i32) {
    %c0_i32 = arith.constant 0 : i32
    %c0_i32_0 = arith.constant 0 : i32
    return %arg0, %c0_i32 : i32, i32
  }
  func.func @transform_16(%arg0: i32) -> (i32, i32) {
    %c0_i32 = arith.constant 0 : i32
    %c0_i32_0 = arith.constant 0 : i32
    return %arg0, %c0_i32 : i32, i32
  }
}

</mosaic_0001>

<llo_original>
// kernel: recon_detection_forward.1
$region0: #{recon_detection_forward.1}
  #allocation0 [shape = 'u32[]', space=smem, size = 0x4, offset = 0x4, fixed_abs, tag = 'smem constant byte address 0x4 - core index']
  #allocation1 [shape = 'u32[144,128]{1,0:T(1,128)}', space=vmem, size = 0x12000, scoped, tag = 'internal scratch']
  %s0 = inlined_call_operand.vmem [shape: f32[128,2], index: 0, kind: input, shape index: {}]
  %s1 = inlined_call_operand.vmem [shape: f32[2,32], index: 1, kind: input, shape index: {}]
  %s2 = inlined_call_operand.vmem [shape: f32[1,32], index: 2, kind: input, shape index: {}]
  %s3 = inlined_call_operand.vmem [shape: f32[32,64], index: 3, kind: input, shape index: {}]
  %s4 = inlined_call_operand.vmem [shape: f32[1,64], index: 4, kind: input, shape index: {}]
  %s5 = inlined_call_operand.vmem [shape: f32[64,128], index: 5, kind: input, shape index: {}]
  %s6 = inlined_call_operand.vmem [shape: f32[1,128], index: 6, kind: input, shape index: {}]
  %s7 = inlined_call_operand.vmem [shape: f32[128,256], index: 7, kind: input, shape index: {}]
  %s8 = inlined_call_operand.vmem [shape: f32[1,256], index: 8, kind: input, shape index: {}]
  %s9 = inlined_call_operand.vmem [shape: f32[256,256], index: 9, kind: input, shape index: {}]
  %s10 = inlined_call_operand.vmem [shape: f32[1,256], index: 10, kind: input, shape index: {}]
  %s11 = inlined_call_operand.vmem [shape: f32[256,256], index: 11, kind: input, shape index: {}]
  %s12 = inlined_call_operand.vmem [shape: f32[1,256], index: 12, kind: input, shape index: {}]
  %s13 = inlined_call_operand.vmem [shape: f32[256,480], index: 13, kind: input, shape index: {}]
  %s14 = inlined_call_operand.vmem [shape: f32[1,480], index: 14, kind: input, shape index: {}]
  %s15 = inlined_call_operand.hbm [shape: f32[128,256], index: 15, kind: output, shape index: {0}]
  %s16 = inlined_call_operand.hbm [shape: f32[128,480], index: 16, kind: output, shape index: {1}]
  %17 = xla_tuple %s15, %s16
  %s18 = sld [smem:[#allocation0]]
  $region78: #{recon_detection_forward.1} parent=0
    _
  %s20 = ssub.s32 1, %s18
  %s21 = scalar_select 0, %s20, %s18
  $region1: #{recon_detection_forward.1} parent=0
    #allocation2 [shape = 'u8[131072]{0}', space=vmem, size = 0x20000, scoped, tag = 'output window, operand 0, single buffered']
    #allocation3 [shape = 's32[1]{0}', space=sflag, size = 0x4, scoped, tag = 'scoped memory for recon_detection_forward.1']
    #allocation4 [shape = 'u8[262144]{0}', space=vmem, size = 0x40000, scoped, tag = 'output window, operand 1, single buffered']
    #allocation5 [shape = 's32[1]{0}', space=sflag, size = 0x4, scoped, tag = 'scoped memory for recon_detection_forward.1']
    %22 = vsyncpa [#allocation3], 0
    %23 = vsyncpa [#allocation5], 0
    // Predicated region
    $region2: #{recon_detection_forward.1} parent=1 // pred_check
      _
    $region3: #{recon_detection_forward.1} parent=1 // pred_check_branch
      %25 = sbr.rel (0) target = $region5
    $region4: #{recon_detection_forward.1} parent=1 // pred_region
      _
    $region5: #{recon_detection_forward.1} parent=1 // pred_fallthru
      _
    // Predicated region
    $region6: #{recon_detection_forward.1} parent=1 // pred_check
      _
    $region7: #{recon_detection_forward.1} parent=1 // pred_check_branch
      %27 = sbr.rel (0) target = $region9
    $region8: #{recon_detection_forward.1} parent=1 // pred_region
      _
    $region9: #{recon_detection_forward.1} parent=1 // pred_fallthru
      _
    // Predicated region
    $region10: #{recon_detection_forward.1} parent=1 // pred_check
      _
    $region11: #{recon_detection_forward.1} parent=1 // pred_check_branch
      %29 = sbr.rel (0) target = $region13
    $region12: #{recon_detection_forward.1} parent=1 // pred_region
      _
    $region13: #{recon_detection_forward.1} parent=1 // pred_fallthru
      _
    // Predicated region
    $region14: #{recon_detection_forward.1} parent=1 // pred_check
      _
    $region15: #{recon_detection_forward.1} parent=1 // pred_check_branch
      %31 = sbr.rel (0) target = $region17
    $region16: #{recon_detection_forward.1} parent=1 // pred_region
      _
    $region17: #{recon_detection_forward.1} parent=1 // pred_fallthru
      _
    // Predicated region
    $region18: #{recon_detection_forward.1} parent=1 // pred_check
      _
    $region19: #{recon_detection_forward.1} parent=1 // pred_check_branch
      %33 = sbr.rel (0) target = $region21
    $region20: #{recon_detection_forward.1} parent=1 // pred_region
      _
    $region21: #{recon_detection_forward.1} parent=1 // pred_fallthru
      _
    // Predicated region
    $region22: #{recon_detection_forward.1} parent=1 // pred_check
      _
    $region23: #{recon_detection_forward.1} parent=1 // pred_check_branch
      %35 = sbr.rel (0) target = $region25
    $region24: #{recon_detection_forward.1} parent=1 // pred_region
      _
    $region25: #{recon_detection_forward.1} parent=1 // pred_fallthru
      _
    // Predicated region
    $region26: #{recon_detection_forward.1} parent=1 // pred_check
      _
    $region27: #{recon_detection_forward.1} parent=1 // pred_check_branch
      %37 = sbr.rel (0) target = $region29
    $region28: #{recon_detection_forward.1} parent=1 // pred_region
      _
    $region29: #{recon_detection_forward.1} parent=1 // pred_fallthru
      _
    // Predicated region
    $region30: #{recon_detection_forward.1} parent=1 // pred_check
      _
    $region31: #{recon_detection_forward.1} parent=1 // pred_check_branch
      %39 = sbr.rel (0) target = $region33
    $region32: #{recon_detection_forward.1} parent=1 // pred_region
      _
    $region33: #{recon_detection_forward.1} parent=1 // pred_fallthru
      _
    // Predicated region
    $region34: #{recon_detection_forward.1} parent=1 // pred_check
      _
    $region35: #{recon_detection_forward.1} parent=1 // pred_check_branch
      %41 = sbr.rel (0) target = $region37
    $region36: #{recon_detection_forward.1} parent=1 // pred_region
      _
    $region37: #{recon_detection_forward.1} parent=1 // pred_fallthru
      _
    // Predicated region
    $region38: #{recon_detection_forward.1} parent=1 // pred_check
      _
    $region39: #{recon_detection_forward.1} parent=1 // pred_check_branch
      %43 = sbr.rel (0) target = $region41
    $region40: #{recon_detection_forward.1} parent=1 // pred_region
      _
    $region41: #{recon_detection_forward.1} parent=1 // pred_fallthru
      _
    // Predicated region
    $region42: #{recon_detection_forward.1} parent=1 // pred_check
      _
    $region43: #{recon_detection_forward.1} parent=1 // pred_check_branch
      %45 = sbr.rel (0) target = $region45
    $region44: #{recon_detection_forward.1} parent=1 // pred_region
      _
    $region45: #{recon_detection_forward.1} parent=1 // pred_fallthru
      _
    // Predicated region
    $region46: #{recon_detection_forward.1} parent=1 // pred_check
      _
    $region47: #{recon_detection_forward.1} parent=1 // pred_check_branch
      %47 = sbr.rel (0) target = $region49
    $region48: #{recon_detection_forward.1} parent=1 // pred_region
      _
    $region49: #{recon_detection_forward.1} parent=1 // pred_fallthru
      _
    // Predicated region
    $region50: #{recon_detection_forward.1} parent=1 // pred_check
      _
    $region51: #{recon_detection_forward.1} parent=1 // pred_check_branch
      %49 = sbr.rel (0) target = $region53
    $region52: #{recon_detection_forward.1} parent=1 // pred_region
      _
    $region53: #{recon_detection_forward.1} parent=1 // pred_fallthru
      _
    // Predicated region
    $region54: #{recon_detection_forward.1} parent=1 // pred_check
      _
    $region55: #{recon_detection_forward.1} parent=1 // pred_check_branch
      %51 = sbr.rel (0) target = $region57
    $region56: #{recon_detection_forward.1} parent=1 // pred_region
      _
    $region57: #{recon_detection_forward.1} parent=1 // pred_fallthru
      _
    // Predicated region
    $region58: #{recon_detection_forward.1} parent=1 // pred_check
      _
    $region59: #{recon_detection_forward.1} parent=1 // pred_check_branch
      %53 = sbr.rel (0) target = $region61
    $region60: #{recon_detection_forward.1} parent=1 // pred_region
      _
    $region61: #{recon_detection_forward.1} parent=1 // pred_fallthru
      _
    %v54 = vld [vmem:[%s0] sm:$0xff]
    %v55 = vld [vmem:[%s0 + $0x8] sm:$0xff]
    %v56 = vld [vmem:[%s0 + $0x10] sm:$0xff]
    %v57 = vld [vmem:[%s0 + $0x18] sm:$0xff]
    %v58 = vld [vmem:[%s0 + $0x20] sm:$0xff]
    %v59 = vld [vmem:[%s0 + $0x28] sm:$0xff]
    %v60 = vld [vmem:[%s0 + $0x30] sm:$0xff]
    %v61 = vld [vmem:[%s0 + $0x38] sm:$0xff]
    %v62 = vld [vmem:[%s0 + $0x40] sm:$0xff]
    %v63 = vld [vmem:[%s0 + $0x48] sm:$0xff]
    %v64 = vld [vmem:[%s0 + $0x50] sm:$0xff]
    %v65 = vld [vmem:[%s0 + $0x58] sm:$0xff]
    %v66 = vld [vmem:[%s0 + $0x60] sm:$0xff]
    %v67 = vld [vmem:[%s0 + $0x68] sm:$0xff]
    %v68 = vld [vmem:[%s0 + $0x70] sm:$0xff]
    %v69 = vld [vmem:[%s0 + $0x78] sm:$0xff]
    %v70 = vld [vmem:[%s1] sm:$0x3]
    %v71 = vld [vmem:[%s2] sm:$0x1]
    %v73 = vlaneseq
    %v74 = vshrl.u32 %v73, 7
    %v75 = vsub.s32 0, %v74
    %v76 = vrot.slane %v71, %v75
    %vm78 = vcmask 15360
    %v80 = vsel %vm78, %v54, 0
    %v83 = vsel %vm78, %v55, 0
    %v86 = vsel %vm78, %v56, 0
    %v89 = vsel %vm78, %v57, 0
    %v92 = vsel %vm78, %v58, 0
    %v95 = vsel %vm78, %v59, 0
    %v98 = vsel %vm78, %v60, 0
    %v101 = vsel %vm78, %v61, 0
    %v104 = vsel %vm78, %v62, 0
    %v107 = vsel %vm78, %v63, 0
    %v110 = vsel %vm78, %v64, 0
    %v113 = vsel %vm78, %v65, 0
    %v116 = vsel %vm78, %v66, 0
    %v119 = vsel %vm78, %v67, 0
    %v122 = vsel %vm78, %v68, 0
    %v125 = vsel %vm78, %v69, 0
    %vm127 = vcmask 1041408
    %v129 = vsel %vm127, %v70, 0
    %131 = vmatprep.subr.mxu0 0.0
    %132 = vmatpush1.msra.mxu0 %v129
    %133 = vmatprep.subr.mxu0 0.0
    %134 = vmatpush1.msra.mxu0 0.0
    %135 = vmatprep.subr.mxu0 0.0
    %136 = vmatpush1.msra.mxu0 0.0
    %137 = vmatprep.subr.mxu0 0.0
    %138 = vmatpush1.msra.mxu0 0.0
    %139 = vmatprep.subr.mxu0 0.0
    %140 = vmatpush1.msra.mxu0 0.0
    %141 = vmatprep.subr.mxu0 0.0
    %142 = vmatpush1.msra.mxu0 0.0
    %143 = vmatprep.subr.mxu0 0.0
    %144 = vmatpush1.msra.mxu0 0.0
    %145 = vmatprep.subr.mxu0 0.0
    %146 = vmatpush1.msra.mxu0 0.0
    %147 = vmatprep.subr.mxu0 0.0
    %148 = vmatpush1.msra.mxu0 0.0
    %149 = vmatprep.subr.mxu0 0.0
    %150 = vmatpush1.msra.mxu0 0.0
    %151 = vmatprep.subr.mxu0 0.0
    %152 = vmatpush1.msra.mxu0 0.0
    %153 = vmatprep.subr.mxu0 0.0
    %154 = vmatpush1.msra.mxu0 0.0
    %155 = vmatprep.subr.mxu0 0.0
    %156 = vmatpush1.msra.mxu0 0.0
    %157 = vmatprep.subr.mxu0 0.0
    %158 = vmatpush1.msra.mxu0 0.0
    %159 = vmatprep.subr.mxu0 0.0
    %160 = vmatpush1.msra.mxu0 0.0
    %161 = vmatprep.subr.mxu0 0.0
    %162 = vmatpush1.msra.mxu0 0.0
    %163 = vmatprep.subr.mxu0 0.0
    %164 = vmatpush1.msra.mxu0 0.0
    %165 = vmatprep.subr.mxu0 0.0
    %166 = vmatpush1.msra.mxu0 0.0
    %167 = vmatprep.subr.mxu0 0.0
    %168 = vmatpush1.msra.mxu0 0.0
    %169 = vmatprep.subr.mxu0 0.0
    %170 = vmatpush1.msra.mxu0 0.0
    %171 = vmatprep.subr.mxu0 0.0
    %172 = vmatpush1.msra.mxu0 0.0
    %173 = vmatprep.subr.mxu0 0.0
    %174 = vmatpush1.msra.mxu0 0.0
    %175 = vmatprep.subr.mxu0 0.0
    %176 = vmatpush1.msra.mxu0 0.0
    %177 = vmatprep.subr.mxu0 0.0
    %178 = vmatpush1.msra.mxu0 0.0
    %179 = vmatprep.subr.mxu0 0.0
    %180 = vmatpush1.msra.mxu0 0.0
    %181 = vmatprep.subr.mxu0 0.0
    %182 = vmatpush1.msra.mxu0 0.0
    %183 = vmatprep.subr.mxu0 0.0
    %184 = vmatpush1.msra.mxu0 0.0
    %185 = vmatprep.subr.mxu0 0.0
    %186 = vmatpush1.msra.mxu0 0.0
    %187 = vmatprep.subr.mxu0 0.0
    %188 = vmatpush1.msra.mxu0 0.0
    %189 = vmatprep.subr.mxu0 0.0
    %190 = vmatpush1.msra.mxu0 0.0
    %191 = vmatprep.subr.mxu0 0.0
    %192 = vmatpush1.msra.mxu0 0.0
    %193 = vmatprep.subr.mxu0 0.0
    %194 = vmatpush1.msra.mxu0 0.0
    %195 = vmatprep.mubr.f32.mxu0 0.0
    %196 = vmatmul.mubr.f32.gmra.mrb[0].mxu0 %v80
    %v197 = vpop.f32.mrb[0].mxu0
    %v198 = vadd.f32 %v76, %v197
    %v199 = vpop.f32.mrb[0].mxu0
    %200 = vmatprep.mubr.f32.mxu0 0.0
    %201 = vmatmul.mubr.f32.gmra.mrb[0].mxu0 %v83
    %v202 = vpop.f32.mrb[0].mxu0
    %v203 = vadd.f32 %v76, %v202
    %v204 = vpop.f32.mrb[0].mxu0
    %205 = vmatprep.mubr.f32.mxu0 0.0
    %206 = vmatmul.mubr.f32.gmra.mrb[0].mxu0 %v86
    %v207 = vpop.f32.mrb[0].mxu0
    %v208 = vadd.f32 %v76, %v207
    %v209 = vpop.f32.mrb[0].mxu0
    %210 = vmatprep.mubr.f32.mxu0 0.0
    %211 = vmatmul.mubr.f32.gmra.mrb[0].mxu0 %v89
    %v212 = vpop.f32.mrb[0].mxu0
    %v213 = vadd.f32 %v76, %v212
    %v214 = vpop.f32.mrb[0].mxu0
    %215 = vmatprep.mubr.f32.mxu0 0.0
    %216 = vmatmul.mubr.f32.gmra.mrb[0].mxu0 %v92
    %v217 = vpop.f32.mrb[0].mxu0
    %v218 = vadd.f32 %v76, %v217
    %v219 = vpop.f32.mrb[0].mxu0
    %220 = vmatprep.mubr.f32.mxu0 0.0
    %221 = vmatmul.mubr.f32.gmra.mrb[0].mxu0 %v95
    %v222 = vpop.f32.mrb[0].mxu0
    %v223 = vadd.f32 %v76, %v222
    %v224 = vpop.f32.mrb[0].mxu0
    %225 = vmatprep.mubr.f32.mxu0 0.0
    %226 = vmatmul.mubr.f32.gmra.mrb[0].mxu0 %v98
    %v227 = vpop.f32.mrb[0].mxu0
    %v228 = vadd.f32 %v76, %v227
    %v229 = vpop.f32.mrb[0].mxu0
    %230 = vmatprep.mubr.f32.mxu0 0.0
    %231 = vmatmul.mubr.f32.gmra.mrb[0].mxu0 %v101
    %v232 = vpop.f32.mrb[0].mxu0
    %v233 = vadd.f32 %v76, %v232
    %v234 = vpop.f32.mrb[0].mxu0
    %235 = vmatprep.mubr.f32.mxu0 0.0
    %236 = vmatmul.mubr.f32.gmra.mrb[0].mxu0 %v104
    %v237 = vpop.f32.mrb[0].mxu0
    %v238 = vadd.f32 %v76, %v237
    %v239 = vpop.f32.mrb[0].mxu0
    %240 = vmatprep.mubr.f32.mxu0 0.0
    %241 = vmatmul.mubr.f32.gmra.mrb[0].mxu0 %v107
    %v242 = vpop.f32.mrb[0].mxu0
    %v243 = vadd.f32 %v76, %v242
    %v244 = vpop.f32.mrb[0].mxu0
    %245 = vmatprep.mubr.f32.mxu0 0.0
    %246 = vmatmul.mubr.f32.gmra.mrb[0].mxu0 %v110
    %v247 = vpop.f32.mrb[0].mxu0
    %v248 = vadd.f32 %v76, %v247
    %v249 = vpop.f32.mrb[0].mxu0
    %250 = vmatprep.mubr.f32.mxu0 0.0
    %251 = vmatmul.mubr.f32.gmra.mrb[0].mxu0 %v113
    %v252 = vpop.f32.mrb[0].mxu0
    %v253 = vadd.f32 %v76, %v252
    %v254 = vpop.f32.mrb[0].mxu0
    %255 = vmatprep.mubr.f32.mxu0 0.0
    %256 = vmatmul.mubr.f32.gmra.mrb[0].mxu0 %v116
    %v257 = vpop.f32.mrb[0].mxu0
    %v258 = vadd.f32 %v76, %v257
    %v259 = vpop.f32.mrb[0].mxu0
    %260 = vmatprep.mubr.f32.mxu0 0.0
    %261 = vmatmul.mubr.f32.gmra.mrb[0].mxu0 %v119
    %v262 = vpop.f32.mrb[0].mxu0
    %v263 = vadd.f32 %v76, %v262
    %v264 = vpop.f32.mrb[0].mxu0
    %265 = vmatprep.mubr.f32.mxu0 0.0
    %266 = vmatmul.mubr.f32.gmra.mrb[0].mxu0 %v122
    %v267 = vpop.f32.mrb[0].mxu0
    %v268 = vadd.f32 %v76, %v267
    %v269 = vpop.f32.mrb[0].mxu0
    %270 = vmatprep.mubr.f32.mxu0 0.0
    %271 = vmatmul.mubr.f32.gmra.mrb[0].mxu0 %v125
    %v272 = vpop.f32.mrb[0].mxu0
    %v273 = vadd.f32 %v76, %v272
    %v274 = vpop.f32.mrb[0].mxu0
    %275 = vdwg.mxu0
    %v276 = vld [vmem:[%s3] sm:$0xff]
    %v277 = vld [vmem:[%s3 + $0x8] sm:$0xff]
    %v278 = vld [vmem:[%s3 + $0x10] sm:$0xff]
    %v279 = vld [vmem:[%s3 + $0x18] sm:$0xff]
    %v280 = vld [vmem:[%s4] sm:$0x1]
    %v282 = vlaneseq
    %v283 = vshrl.u32 %v282, 7
    %v284 = vsub.s32 0, %v283
    %v285 = vrot.slane %v280, %v284
    %vm287 = vcmask 261120
    %v289 = vsel %vm287, %v198, 0
    %v292 = vsel %vm287, %v203, 0
    %v295 = vsel %vm287, %v208, 0
    %v298 = vsel %vm287, %v213, 0
    %v301 = vsel %vm287, %v218, 0
    %v304 = vsel %vm287, %v223, 0
    %v307 = vsel %vm287, %v228, 0
    %v310 = vsel %vm287, %v233, 0
    %v313 = vsel %vm287, %v238, 0
    %v316 = vsel %vm287, %v243, 0
    %v319 = vsel %vm287, %v248, 0
    %v322 = vsel %vm287, %v253, 0
    %v325 = vsel %vm287, %v258, 0
    %v328 = vsel %vm287, %v263, 0
    %v331 = vsel %vm287, %v268, 0
    %v334 = vsel %vm287, %v273, 0
    %336 = vmatprep.subr.mxu0 0.0
    %337 = vmatpush1.msra.mxu0 %v276
    %338 = vmatprep.subr.mxu0 0.0
    %339 = vmatpush1.msra.mxu0 %v277
    %340 = vmatprep.subr.mxu0 0.0
    %341 = vmatpush1.msra.mxu0 %v278
    %342 = vmatprep.subr.mxu0 0.0
    %343 = vmatpush1.msra.mxu0 %v279
    %344 = vmatprep.subr.mxu0 0.0
    %345 = vmatpush1.msra.mxu0 0.0
    %346 = vmatprep.subr.mxu0 0.0
    %347 = vmatpush1.msra.mxu0 0.0
    %348 = vmatprep.subr.mxu0 0.0
    %349 = vmatpush1.msra.mxu0 0.0
    %350 = vmatprep.subr.mxu0 0.0
    %351 = vmatpush1.msra.mxu0 0.0
    %352 = vmatprep.subr.mxu0 0.0
    %353 = vmatpush1.msra.mxu0 0.0
    %354 = vmatprep.subr.mxu0 0.0
    %355 = vmatpush1.msra.mxu0 0.0
    %356 = vmatprep.subr.mxu0 0.0
    %357 = vmatpush1.msra.mxu0 0.0
    %358 = vmatprep.subr.mxu0 0.0
    %359 = vmatpush1.msra.mxu0 0.0
    %360 = vmatprep.subr.mxu0 0.0
    %361 = vmatpush1.msra.mxu0 0.0
    %362 = vmatprep.subr.mxu0 0.0
    %363 = vmatpush1.msra.mxu0 0.0
    %364 = vmatprep.subr.mxu0 0.0
    %365 = vmatpush1.msra.mxu0 0.0
    %366 = vmatprep.subr.mxu0 0.0
    %367 = vmatpush1.msra.mxu0 0.0
    %368 = vmatprep.subr.mxu0 0.0
    %369 = vmatpush1.msra.mxu0 0.0
    %370 = vmatprep.subr.mxu0 0.0
    %371 = vmatpush1.msra.mxu0 0.0
    %372 = vmatprep.subr.mxu0 0.0
    %373 = vmatpush1.msra.mxu0 0.0
    %374 = vmatprep.subr.mxu0 0.0
    %375 = vmatpush1.msra.mxu0 0.0
    %376 = vmatprep.subr.mxu0 0.0
    %377 = vmatpush1.msra.mxu0 0.0
    %378 = vmatprep.subr.mxu0 0.0
    %379 = vmatpush1.msra.mxu0 0.0
    %380 = vmatprep.subr.mxu0 0.0
    %381 = vmatpush1.msra.mxu0 0.0
    %382 = vmatprep.subr.mxu0 0.0
    %383 = vmatpush1.msra.mxu0 0.0
    %384 = vmatprep.subr.mxu0 0.0
    %385 = vmatpush1.msra.mxu0 0.0
    %386 = vmatprep.subr.mxu0 0.0
    %387 = vmatpush1.msra.mxu0 0.0
    %388 = vmatprep.subr.mxu0 0.0
    %389 = vmatpush1.msra.mxu0 0.0
    %390 = vmatprep.subr.mxu0 0.0
    %391 = vmatpush1.msra.mxu0 0.0
    %392 = vmatprep.subr.mxu0 0.0
    %393 = vmatpush1.msra.mxu0 0.0
    %394 = vmatprep.subr.mxu0 0.0
    %395 = vmatpush1.msra.mxu0 0.0
    %396 = vmatprep.subr.mxu0 0.0
    %397 = vmatpush1.msra.mxu0 0.0
    %398 = vmatprep.subr.mxu0 0.0
    %399 = vmatpush1.msra.mxu0 0.0
    %400 = vmatprep.mubr.f32.mxu0 0.0
    %401 = vmatmul.mubr.f32.gmra.mrb[0].mxu0 %v289
    %v402 = vpop.f32.mrb[0].mxu0
    %v403 = vadd.f32 %v285, %v402
    %v404 = vpop.f32.mrb[0].mxu0
    %405 = vmatprep.mubr.f32.mxu0 0.0
    %406 = vmatmul.mubr.f32.gmra.mrb[0].mxu0 %v292
    %v407 = vpop.f32.mrb[0].mxu0
    %v408 = vadd.f32 %v285, %v407
    %v409 = vpop.f32.mrb[0].mxu0
    %410 = vmatprep.mubr.f32.mxu0 0.0
    %411 = vmatmul.mubr.f32.gmra.mrb[0].mxu0 %v295
    %v412 = vpop.f32.mrb[0].mxu0
    %v413 = vadd.f32 %v285, %v412
    %v414 = vpop.f32.mrb[0].mxu0
    %415 = vmatprep.mubr.f32.mxu0 0.0
    %416 = vmatmul.mubr.f32.gmra.mrb[0].mxu0 %v298
    %v417 = vpop.f32.mrb[0].mxu0
    %v418 = vadd.f32 %v285, %v417
    %v419 = vpop.f32.mrb[0].mxu0
    %420 = vmatprep.mubr.f32.mxu0 0.0
    %421 = vmatmul.mubr.f32.gmra.mrb[0].mxu0 %v301
    %v422 = vpop.f32.mrb[0].mxu0
    %v423 = vadd.f32 %v285, %v422
    %v424 = vpop.f32.mrb[0].mxu0
    %425 = vmatprep.mubr.f32.mxu0 0.0
    %426 = vmatmul.mubr.f32.gmra.mrb[0].mxu0 %v304
    %v427 = vpop.f32.mrb[0].mxu0
    %v428 = vadd.f32 %v285, %v427
    %v429 = vpop.f32.mrb[0].mxu0
    %430 = vmatprep.mubr.f32.mxu0 0.0
    %431 = vmatmul.mubr.f32.gmra.mrb[0].mxu0 %v307
    %v432 = vpop.f32.mrb[0].mxu0
    %v433 = vadd.f32 %v285, %v432
    %v434 = vpop.f32.mrb[0].mxu0
    %435 = vmatprep.mubr.f32.mxu0 0.0
    %436 = vmatmul.mubr.f32.gmra.mrb[0].mxu0 %v310
    %v437 = vpop.f32.mrb[0].mxu0
    %v438 = vadd.f32 %v285, %v437
    %v439 = vpop.f32.mrb[0].mxu0
    %440 = vmatprep.mubr.f32.mxu0 0.0
    %441 = vmatmul.mubr.f32.gmra.mrb[0].mxu0 %v313
    %v442 = vpop.f32.mrb[0].mxu0
    %v443 = vadd.f32 %v285, %v442
    %v444 = vpop.f32.mrb[0].mxu0
    %445 = vmatprep.mubr.f32.mxu0 0.0
    %446 = vmatmul.mubr.f32.gmra.mrb[0].mxu0 %v316
    %v447 = vpop.f32.mrb[0].mxu0
    %v448 = vadd.f32 %v285, %v447
    %v449 = vpop.f32.mrb[0].mxu0
    %450 = vmatprep.mubr.f32.mxu0 0.0
    %451 = vmatmul.mubr.f32.gmra.mrb[0].mxu0 %v319
    %v452 = vpop.f32.mrb[0].mxu0
    %v453 = vadd.f32 %v285, %v452
    %v454 = vpop.f32.mrb[0].mxu0
    %455 = vmatprep.mubr.f32.mxu0 0.0
    %456 = vmatmul.mubr.f32.gmra.mrb[0].mxu0 %v322
    %v457 = vpop.f32.mrb[0].mxu0
    %v458 = vadd.f32 %v285, %v457
    %v459 = vpop.f32.mrb[0].mxu0
    %460 = vmatprep.mubr.f32.mxu0 0.0
    %461 = vmatmul.mubr.f32.gmra.mrb[0].mxu0 %v325
    %v462 = vpop.f32.mrb[0].mxu0
    %v463 = vadd.f32 %v285, %v462
    %v464 = vpop.f32.mrb[0].mxu0
    %465 = vmatprep.mubr.f32.mxu0 0.0
    %466 = vmatmul.mubr.f32.gmra.mrb[0].mxu0 %v328
    %v467 = vpop.f32.mrb[0].mxu0
    %v468 = vadd.f32 %v285, %v467
    %v469 = vpop.f32.mrb[0].mxu0
    %470 = vmatprep.mubr.f32.mxu0 0.0
    %471 = vmatmul.mubr.f32.gmra.mrb[0].mxu0 %v331
    %v472 = vpop.f32.mrb[0].mxu0
    %v473 = vadd.f32 %v285, %v472
    %v474 = vpop.f32.mrb[0].mxu0
    %475 = vmatprep.mubr.f32.mxu0 0.0
    %476 = vmatmul.mubr.f32.gmra.mrb[0].mxu0 %v334
    %v477 = vpop.f32.mrb[0].mxu0
    %v478 = vadd.f32 %v285, %v477
    %v479 = vpop.f32.mrb[0].mxu0
    %480 = vdwg.mxu0
    %v481 = vld [vmem:[%s5] sm:$0xff]
    %v482 = vld [vmem:[%s5 + $0x8] sm:$0xff]
    %v483 = vld [vmem:[%s5 + $0x10] sm:$0xff]
    %v484 = vld [vmem:[%s5 + $0x18] sm:$0xff]
    %v485 = vld [vmem:[%s5 + $0x20] sm:$0xff]
    %v486 = vld [vmem:[%s5 + $0x28] sm:$0xff]
    %v487 = vld [vmem:[%s5 + $0x30] sm:$0xff]
    %v488 = vld [vmem:[%s5 + $0x38] sm:$0xff]
    %v489 = vld [vmem:[%s6] sm:$0x1]
    %v491 = vlaneseq
    %v492 = vshrl.u32 %v491, 7
    %v493 = vsub.s32 0, %v492
    %v494 = vrot.slane %v489, %v493
    %vm496 = vcmask 523264
    %v498 = vsel %vm496, %v403, 0
    %v501 = vsel %vm496, %v408, 0
    %v504 = vsel %vm496, %v413, 0
    %v507 = vsel %vm496, %v418, 0
    %v510 = vsel %vm496, %v423, 0
    %v513 = vsel %vm496, %v428, 0
    %v516 = vsel %vm496, %v433, 0
    %v519 = vsel %vm496, %v438, 0
    %v522 = vsel %vm496, %v443, 0
    %v525 = vsel %vm496, %v448, 0
    %v528 = vsel %vm496, %v453, 0
    %v531 = vsel %vm496, %v458, 0
    %v534 = vsel %vm496, %v463, 0
    %v537 = vsel %vm496, %v468, 0
    %v540 = vsel %vm496, %v473, 0
    %v543 = vsel %vm496, %v478, 0
    %545 = vmatprep.subr.mxu0 0.0
    %546 = vmatpush1.msra.mxu0 %v481
    %547 = vmatprep.subr.mxu0 0.0
    %548 = vmatpush1.msra.mxu0 %v482
    %549 = vmatprep.subr.mxu0 0.0
    %550 = vmatpush1.msra.mxu0 %v483
    %551 = vmatprep.subr.mxu0 0.0
    %552 = vmatpush1.msra.mxu0 %v484
    %553 = vmatprep.subr.mxu0 0.0
    %554 = vmatpush1.msra.mxu0 %v485
    %555 = vmatprep.subr.mxu0 0.0
    %556 = vmatpush1.msra.mxu0 %v486
    %557 = vmatprep.subr.mxu0 0.0
    %558 = vmatpush1.msra.mxu0 %v487
    %559 = vmatprep.subr.mxu0 0.0
    %560 = vmatpush1.msra.mxu0 %v488
    %561 = vmatprep.subr.mxu0 0.0
    %562 = vmatpush1.msra.mxu0 0.0
    %563 = vmatprep.subr.mxu0 0.0
    %564 = vmatpush1.msra.mxu0 0.0
    %565 = vmatprep.subr.mxu0 0.0
    %566 = vmatpush1.msra.mxu0 0.0
    %567 = vmatprep.subr.mxu0 0.0
    %568 = vmatpush1.msra.mxu0 0.0
    %569 = vmatprep.subr.mxu0 0.0
    %570 = vmatpush1.msra.mxu0 0.0
    %571 = vmatprep.subr.mxu0 0.0
    %572 = vmatpush1.msra.mxu0 0.0
    %573 = vmatprep.subr.mxu0 0.0
    %574 = vmatpush1.msra.mxu0 0.0
    %575 = vmatprep.subr.mxu0 0.0
    %576 = vmatpush1.msra.mxu0 0.0
    %577 = vmatprep.subr.mxu0 0.0
    %578 = vmatpush1.msra.mxu0 0.0
    %579 = vmatprep.subr.mxu0 0.0
    %580 = vmatpush1.msra.mxu0 0.0
    %581 = vmatprep.subr.mxu0 0.0
    %582 = vmatpush1.msra.mxu0 0.0
    %583 = vmatprep.subr.mxu0 0.0
    %584 = vmatpush1.msra.mxu0 0.0
    %585 = vmatprep.subr.mxu0 0.0
    %586 = vmatpush1.msra.mxu0 0.0
    %587 = vmatprep.subr.mxu0 0.0
    %588 = vmatpush1.msra.mxu0 0.0
    %589 = vmatprep.subr.mxu0 0.0
    %590 = vmatpush1.msra.mxu0 0.0
    %591 = vmatprep.subr.mxu0 0.0
    %592 = vmatpush1.msra.mxu0 0.0
    %593 = vmatprep.subr.mxu0 0.0
    %594 = vmatpush1.msra.mxu0 0.0
    %595 = vmatprep.subr.mxu0 0.0
    %596 = vmatpush1.msra.mxu0 0.0
    %597 = vmatprep.subr.mxu0 0.0
    %598 = vmatpush1.msra.mxu0 0.0
    %599 = vmatprep.subr.mxu0 0.0
    %600 = vmatpush1.msra.mxu0 0.0
    %601 = vmatprep.subr.mxu0 0.0
    %602 = vmatpush1.msra.mxu0 0.0
    %603 = vmatprep.subr.mxu0 0.0
    %604 = vmatpush1.msra.mxu0 0.0
    %605 = vmatprep.subr.mxu0 0.0
    %606 = vmatpush1.msra.mxu0 0.0
    %607 = vmatprep.subr.mxu0 0.0
    %608 = vmatpush1.msra.mxu0 0.0
    %609 = vmatprep.mubr.f32.mxu0 0.0
    %610 = vmatmul.mubr.f32.gmra.mrb[0].mxu0 %v498
    %v611 = vpop.f32.mrb[0].mxu0
    %v612 = vadd.f32 %v494, %v611
    %v613 = vpop.f32.mrb[0].mxu0
    %614 = vmatprep.mubr.f32.mxu0 0.0
    %615 = vmatmul.mubr.f32.gmra.mrb[0].mxu0 %v501
    %v616 = vpop.f32.mrb[0].mxu0
    %v617 = vadd.f32 %v494, %v616
    %v618 = vpop.f32.mrb[0].mxu0
    %619 = vmatprep.mubr.f32.mxu0 0.0
    %620 = vmatmul.mubr.f32.gmra.mrb[0].mxu0 %v504
    %v621 = vpop.f32.mrb[0].mxu0
    %v622 = vadd.f32 %v494, %v621
    %v623 = vpop.f32.mrb[0].mxu0
    %624 = vmatprep.mubr.f32.mxu0 0.0
    %625 = vmatmul.mubr.f32.gmra.mrb[0].mxu0 %v507
    %v626 = vpop.f32.mrb[0].mxu0
    %v627 = vadd.f32 %v494, %v626
    %v628 = vpop.f32.mrb[0].mxu0
    %629 = vmatprep.mubr.f32.mxu0 0.0
    %630 = vmatmul.mubr.f32.gmra.mrb[0].mxu0 %v510
    %v631 = vpop.f32.mrb[0].mxu0
    %v632 = vadd.f32 %v494, %v631
    %v633 = vpop.f32.mrb[0].mxu0
    %634 = vmatprep.mubr.f32.mxu0 0.0
    %635 = vmatmul.mubr.f32.gmra.mrb[0].mxu0 %v513
    %v636 = vpop.f32.mrb[0].mxu0
    %v637 = vadd.f32 %v494, %v636
    %v638 = vpop.f32.mrb[0].mxu0
    %639 = vmatprep.mubr.f32.mxu0 0.0
    %640 = vmatmul.mubr.f32.gmra.mrb[0].mxu0 %v516
    %v641 = vpop.f32.mrb[0].mxu0
    %v642 = vadd.f32 %v494, %v641
    %v643 = vpop.f32.mrb[0].mxu0
    %644 = vmatprep.mubr.f32.mxu0 0.0
    %645 = vmatmul.mubr.f32.gmra.mrb[0].mxu0 %v519
    %v646 = vpop.f32.mrb[0].mxu0
    %v647 = vadd.f32 %v494, %v646
    %v648 = vpop.f32.mrb[0].mxu0
    %649 = vmatprep.mubr.f32.mxu0 0.0
    %650 = vmatmul.mubr.f32.gmra.mrb[0].mxu0 %v522
    %v651 = vpop.f32.mrb[0].mxu0
    %v652 = vadd.f32 %v494, %v651
    %v653 = vpop.f32.mrb[0].mxu0
    %654 = vmatprep.mubr.f32.mxu0 0.0
    %655 = vmatmul.mubr.f32.gmra.mrb[0].mxu0 %v525
    %v656 = vpop.f32.mrb[0].mxu0
    %v657 = vadd.f32 %v494, %v656
    %v658 = vpop.f32.mrb[0].mxu0
    %659 = vmatprep.mubr.f32.mxu0 0.0
    %660 = vmatmul.mubr.f32.gmra.mrb[0].mxu0 %v528
    %v661 = vpop.f32.mrb[0].mxu0
    %v662 = vadd.f32 %v494, %v661
    %v663 = vpop.f32.mrb[0].mxu0
    %664 = vmatprep.mubr.f32.mxu0 0.0
    %665 = vmatmul.mubr.f32.gmra.mrb[0].mxu0 %v531
    %v666 = vpop.f32.mrb[0].mxu0
    %v667 = vadd.f32 %v494, %v666
    %v668 = vpop.f32.mrb[0].mxu0
    %669 = vmatprep.mubr.f32.mxu0 0.0
    %670 = vmatmul.mubr.f32.gmra.mrb[0].mxu0 %v534
    %v671 = vpop.f32.mrb[0].mxu0
    %v672 = vadd.f32 %v494, %v671
    %v673 = vpop.f32.mrb[0].mxu0
    %674 = vmatprep.mubr.f32.mxu0 0.0
    %675 = vmatmul.mubr.f32.gmra.mrb[0].mxu0 %v537
    %v676 = vpop.f32.mrb[0].mxu0
    %v677 = vadd.f32 %v494, %v676
    %v678 = vpop.f32.mrb[0].mxu0
    %679 = vmatprep.mubr.f32.mxu0 0.0
    %680 = vmatmul.mubr.f32.gmra.mrb[0].mxu0 %v540
    %v681 = vpop.f32.mrb[0].mxu0
    %v682 = vadd.f32 %v494, %v681
    %v683 = vpop.f32.mrb[0].mxu0
    %684 = vmatprep.mubr.f32.mxu0 0.0
    %685 = vmatmul.mubr.f32.gmra.mrb[0].mxu0 %v543
    %v686 = vpop.f32.mrb[0].mxu0
    %v687 = vadd.f32 %v494, %v686
    %v688 = vpop.f32.mrb[0].mxu0
    %689 = vdwg.mxu0
    %v690 = vld [vmem:[%s7] sm:$0xff]
    %v691 = vld [vmem:[%s7 + $0x8] sm:$0xff]
    %v692 = vld [vmem:[%s7 + $0x10] sm:$0xff]
    %v693 = vld [vmem:[%s7 + $0x18] sm:$0xff]
    %v694 = vld [vmem:[%s7 + $0x20] sm:$0xff]
    %v695 = vld [vmem:[%s7 + $0x28] sm:$0xff]
    %v696 = vld [vmem:[%s7 + $0x30] sm:$0xff]
    %v697 = vld [vmem:[%s7 + $0x38] sm:$0xff]
    %v698 = vld [vmem:[%s7 + $0x40] sm:$0xff]
    %v699 = vld [vmem:[%s7 + $0x48] sm:$0xff]
    %v700 = vld [vmem:[%s7 + $0x50] sm:$0xff]
    %v701 = vld [vmem:[%s7 + $0x58] sm:$0xff]
    %v702 = vld [vmem:[%s7 + $0x60] sm:$0xff]
    %v703 = vld [vmem:[%s7 + $0x68] sm:$0xff]
    %v704 = vld [vmem:[%s7 + $0x70] sm:$0xff]
    %v705 = vld [vmem:[%s7 + $0x78] sm:$0xff]
    %v706 = vld [vmem:[%s7 + $0x80] sm:$0xff]
    %v707 = vld [vmem:[%s7 + $0x88] sm:$0xff]
    %v708 = vld [vmem:[%s7 + $0x90] sm:$0xff]
    %v709 = vld [vmem:[%s7 + $0x98] sm:$0xff]
    %v710 = vld [vmem:[%s7 + $0xa0] sm:$0xff]
    %v711 = vld [vmem:[%s7 + $0xa8] sm:$0xff]
    %v712 = vld [vmem:[%s7 + $0xb0] sm:$0xff]
    %v713 = vld [vmem:[%s7 + $0xb8] sm:$0xff]
    %v714 = vld [vmem:[%s7 + $0xc0] sm:$0xff]
    %v715 = vld [vmem:[%s7 + $0xc8] sm:$0xff]
    %v716 = vld [vmem:[%s7 + $0xd0] sm:$0xff]
    %v717 = vld [vmem:[%s7 + $0xd8] sm:$0xff]
    %v718 = vld [vmem:[%s7 + $0xe0] sm:$0xff]
    %v719 = vld [vmem:[%s7 + $0xe8] sm:$0xff]
    %v720 = vld [vmem:[%s7 + $0xf0] sm:$0xff]
    %v721 = vld [vmem:[%s7 + $0xf8] sm:$0xff]
    %v722 = vld [vmem:[%s8] sm:$0x3]
    %v724 = vlaneseq
    %v725 = vshrl.u32 %v724, 7
    %v726 = vsub.s32 0, %v725
    %v727 = vrot.slane %v722, %v726
    %v728 = vlaneseq
    %v729 = vshrl.u32 %v728, 7
    %v730 = vsub.s32 1, %v729
    %v731 = vrot.slane %v722, %v730
    %734 = vmatprep.subr.mxu0 %v691
    %735 = vmatpush1.msra.mxu0 %v690
    %736 = vmatprep.subr.mxu0 %v693
    %737 = vmatpush1.msra.mxu0 %v692
    %738 = vmatprep.subr.mxu0 %v695
    %739 = vmatpush1.msra.mxu0 %v694
    %740 = vmatprep.subr.mxu0 %v697
    %741 = vmatpush1.msra.mxu0 %v696
    %742 = vmatprep.subr.mxu0 %v699
    %743 = vmatpush1.msra.mxu0 %v698
    %744 = vmatprep.subr.mxu0 %v701
    %745 = vmatpush1.msra.mxu0 %v700
    %746 = vmatprep.subr.mxu0 %v703
    %747 = vmatpush1.msra.mxu0 %v702
    %748 = vmatprep.subr.mxu0 %v705
    %749 = vmatpush1.msra.mxu0 %v704
    %750 = vmatprep.subr.mxu0 %v707
    %751 = vmatpush1.msra.mxu0 %v706
    %752 = vmatprep.subr.mxu0 %v709
    %753 = vmatpush1.msra.mxu0 %v708
    %754 = vmatprep.subr.mxu0 %v711
    %755 = vmatpush1.msra.mxu0 %v710
    %756 = vmatprep.subr.mxu0 %v713
    %757 = vmatpush1.msra.mxu0 %v712
    %758 = vmatprep.subr.mxu0 %v715
    %759 = vmatpush1.msra.mxu0 %v714
    %760 = vmatprep.subr.mxu0 %v717
    %761 = vmatpush1.msra.mxu0 %v716
    %762 = vmatprep.subr.mxu0 %v719
    %763 = vmatpush1.msra.mxu0 %v718
    %764 = vmatprep.subr.mxu0 %v721
    %765 = vmatpush1.msra.mxu0 %v720
    %766 = vmatprep.subr.mxu0 0.0
    %767 = vmatpush1.msra.mxu0 0.0
    %768 = vmatprep.subr.mxu0 0.0
    %769 = vmatpush1.msra.mxu0 0.0
    %770 = vmatprep.subr.mxu0 0.0
    %771 = vmatpush1.msra.mxu0 0.0
    %772 = vmatprep.subr.mxu0 0.0
    %773 = vmatpush1.msra.mxu0 0.0
    %774 = vmatprep.subr.mxu0 0.0
    %775 = vmatpush1.msra.mxu0 0.0
    %776 = vmatprep.subr.mxu0 0.0
    %777 = vmatpush1.msra.mxu0 0.0
    %778 = vmatprep.subr.mxu0 0.0
    %779 = vmatpush1.msra.mxu0 0.0
    %780 = vmatprep.subr.mxu0 0.0
    %781 = vmatpush1.msra.mxu0 0.0
    %782 = vmatprep.subr.mxu0 0.0
    %783 = vmatpush1.msra.mxu0 0.0
    %784 = vmatprep.subr.mxu0 0.0
    %785 = vmatpush1.msra.mxu0 0.0
    %786 = vmatprep.subr.mxu0 0.0
    %787 = vmatpush1.msra.mxu0 0.0
    %788 = vmatprep.subr.mxu0 0.0
    %789 = vmatpush1.msra.mxu0 0.0
    %790 = vmatprep.subr.mxu0 0.0
    %791 = vmatpush1.msra.mxu0 0.0
    %792 = vmatprep.subr.mxu0 0.0
    %793 = vmatpush1.msra.mxu0 0.0
    %794 = vmatprep.subr.mxu0 0.0
    %795 = vmatpush1.msra.mxu0 0.0
    %796 = vmatprep.subr.mxu0 0.0
    %797 = vmatpush1.msra.mxu0 0.0
    %798 = vmatprep.mubr.f32.mxu0 0.0
    %799 = vmatmul.mubr.f32.gmra.mrb[0].mxu0 %v612
    %v800 = vpop.f32.mrb[0].mxu0
    %v801 = vadd.f32 %v727, %v800
    %v802 = vpop.f32.mrb[0].mxu0
    %v803 = vadd.f32 %v731, %v802
    %804 = vmatprep.mubr.f32.mxu0 0.0
    %805 = vmatmul.mubr.f32.gmra.mrb[0].mxu0 %v617
    %v806 = vpop.f32.mrb[0].mxu0
    %v807 = vadd.f32 %v727, %v806
    %v808 = vpop.f32.mrb[0].mxu0
    %v809 = vadd.f32 %v731, %v808
    %810 = vmatprep.mubr.f32.mxu0 0.0
    %811 = vmatmul.mubr.f32.gmra.mrb[0].mxu0 %v622
    %v812 = vpop.f32.mrb[0].mxu0
    %v813 = vadd.f32 %v727, %v812
    %v814 = vpop.f32.mrb[0].mxu0
    %v815 = vadd.f32 %v731, %v814
    %816 = vmatprep.mubr.f32.mxu0 0.0
    %817 = vmatmul.mubr.f32.gmra.mrb[0].mxu0 %v627
    %v818 = vpop.f32.mrb[0].mxu0
    %v819 = vadd.f32 %v727, %v818
    %v820 = vpop.f32.mrb[0].mxu0
    %v821 = vadd.f32 %v731, %v820
    %822 = vmatprep.mubr.f32.mxu0 0.0
    %823 = vmatmul.mubr.f32.gmra.mrb[0].mxu0 %v632
    %v824 = vpop.f32.mrb[0].mxu0
    %v825 = vadd.f32 %v727, %v824
    %v826 = vpop.f32.mrb[0].mxu0
    %v827 = vadd.f32 %v731, %v826
    %828 = vmatprep.mubr.f32.mxu0 0.0
    %829 = vmatmul.mubr.f32.gmra.mrb[0].mxu0 %v637
    %v830 = vpop.f32.mrb[0].mxu0
    %v831 = vadd.f32 %v727, %v830
    %v832 = vpop.f32.mrb[0].mxu0
    %v833 = vadd.f32 %v731, %v832
    %834 = vmatprep.mubr.f32.mxu0 0.0
    %835 = vmatmul.mubr.f32.gmra.mrb[0].mxu0 %v642
    %v836 = vpop.f32.mrb[0].mxu0
    %v837 = vadd.f32 %v727, %v836
    %v838 = vpop.f32.mrb[0].mxu0
    %v839 = vadd.f32 %v731, %v838
    %840 = vmatprep.mubr.f32.mxu0 0.0
    %841 = vmatmul.mubr.f32.gmra.mrb[0].mxu0 %v647
    %v842 = vpop.f32.mrb[0].mxu0
    %v843 = vadd.f32 %v727, %v842
    %v844 = vpop.f32.mrb[0].mxu0
    %v845 = vadd.f32 %v731, %v844
    %846 = vmatprep.mubr.f32.mxu0 0.0
    %847 = vmatmul.mubr.f32.gmra.mrb[0].mxu0 %v652
    %v848 = vpop.f32.mrb[0].mxu0
    %v849 = vadd.f32 %v727, %v848
    %v850 = vpop.f32.mrb[0].mxu0
    %v851 = vadd.f32 %v731, %v850
    %852 = vmatprep.mubr.f32.mxu0 0.0
    %853 = vmatmul.mubr.f32.gmra.mrb[0].mxu0 %v657
    %v854 = vpop.f32.mrb[0].mxu0
    %v855 = vadd.f32 %v727, %v854
    %v856 = vpop.f32.mrb[0].mxu0
    %v857 = vadd.f32 %v731, %v856
    %858 = vmatprep.mubr.f32.mxu0 0.0
    %859 = vmatmul.mubr.f32.gmra.mrb[0].mxu0 %v662
    %v860 = vpop.f32.mrb[0].mxu0
    %v861 = vadd.f32 %v727, %v860
    %v862 = vpop.f32.mrb[0].mxu0
    %v863 = vadd.f32 %v731, %v862
    %864 = vmatprep.mubr.f32.mxu0 0.0
    %865 = vmatmul.mubr.f32.gmra.mrb[0].mxu0 %v667
    %v866 = vpop.f32.mrb[0].mxu0
    %v867 = vadd.f32 %v727, %v866
    %v868 = vpop.f32.mrb[0].mxu0
    %v869 = vadd.f32 %v731, %v868
    %870 = vmatprep.mubr.f32.mxu0 0.0
    %871 = vmatmul.mubr.f32.gmra.mrb[0].mxu0 %v672
    %v872 = vpop.f32.mrb[0].mxu0
    %v873 = vadd.f32 %v727, %v872
    %v874 = vpop.f32.mrb[0].mxu0
    %v875 = vadd.f32 %v731, %v874
    %876 = vmatprep.mubr.f32.mxu0 0.0
    %877 = vmatmul.mubr.f32.gmra.mrb[0].mxu0 %v677
    %v878 = vpop.f32.mrb[0].mxu0
    %v879 = vadd.f32 %v727, %v878
    %v880 = vpop.f32.mrb[0].mxu0
    %v881 = vadd.f32 %v731, %v880
    %882 = vmatprep.mubr.f32.mxu0 0.0
    %883 = vmatmul.mubr.f32.gmra.mrb[0].mxu0 %v682
    %v884 = vpop.f32.mrb[0].mxu0
    %v885 = vadd.f32 %v727, %v884
    %v886 = vpop.f32.mrb[0].mxu0
    %v887 = vadd.f32 %v731, %v886
    %888 = vmatprep.mubr.f32.mxu0 0.0
    %889 = vmatmul.mubr.f32.gmra.mrb[0].mxu0 %v687
    %v890 = vpop.f32.mrb[0].mxu0
    %v891 = vadd.f32 %v727, %v890
    %v892 = vpop.f32.mrb[0].mxu0
    %v893 = vadd.f32 %v731, %v892
    %894 = vdwg.mxu0
    %v895 = vld [vmem:[%s9] sm:$0xff]
    %v896 = vld [vmem:[%s9 + $0x8] sm:$0xff]
    %v897 = vld [vmem:[%s9 + $0x10] sm:$0xff]
    %v898 = vld [vmem:[%s9 + $0x18] sm:$0xff]
    %v899 = vld [vmem:[%s9 + $0x20] sm:$0xff]
    %v900 = vld [vmem:[%s9 + $0x28] sm:$0xff]
    %v901 = vld [vmem:[%s9 + $0x30] sm:$0xff]
    %v902 = vld [vmem:[%s9 + $0x38] sm:$0xff]
    %v903 = vld [vmem:[%s9 + $0x40] sm:$0xff]
    %v904 = vld [vmem:[%s9 + $0x48] sm:$0xff]
    %v905 = vld [vmem:[%s9 + $0x50] sm:$0xff]
    %v906 = vld [vmem:[%s9 + $0x58] sm:$0xff]
    %v907 = vld [vmem:[%s9 + $0x60] sm:$0xff]
    %v908 = vld [vmem:[%s9 + $0x68] sm:$0xff]
    %v909 = vld [vmem:[%s9 + $0x70] sm:$0xff]
    %v910 = vld [vmem:[%s9 + $0x78] sm:$0xff]
    %v911 = vld [vmem:[%s9 + $0x80] sm:$0xff]
    %v912 = vld [vmem:[%s9 + $0x88] sm:$0xff]
    %v913 = vld [vmem:[%s9 + $0x90] sm:$0xff]
    %v914 = vld [vmem:[%s9 + $0x98] sm:$0xff]
    %v915 = vld [vmem:[%s9 + $0xa0] sm:$0xff]
    %v916 = vld [vmem:[%s9 + $0xa8] sm:$0xff]
    %v917 = vld [vmem:[%s9 + $0xb0] sm:$0xff]
    %v918 = vld [vmem:[%s9 + $0xb8] sm:$0xff]
    %v919 = vld [vmem:[%s9 + $0xc0] sm:$0xff]
    %v920 = vld [vmem:[%s9 + $0xc8] sm:$0xff]
    %v921 = vld [vmem:[%s9 + $0xd0] sm:$0xff]
    %v922 = vld [vmem:[%s9 + $0xd8] sm:$0xff]
    %v923 = vld [vmem:[%s9 + $0xe0] sm:$0xff]
    %v924 = vld [vmem:[%s9 + $0xe8] sm:$0xff]
    %v925 = vld [vmem:[%s9 + $0xf0] sm:$0xff]
    %v926 = vld [vmem:[%s9 + $0xf8] sm:$0xff]
    %v927 = vld [vmem:[%s9 + $0x100] sm:$0xff]
    %v928 = vld [vmem:[%s9 + $0x108] sm:$0xff]
    %v929 = vld [vmem:[%s9 + $0x110] sm:$0xff]
    %v930 = vld [vmem:[%s9 + $0x118] sm:$0xff]
    %v931 = vld [vmem:[%s9 + $0x120] sm:$0xff]
    %v932 = vld [vmem:[%s9 + $0x128] sm:$0xff]
    %v933 = vld [vmem:[%s9 + $0x130] sm:$0xff]
    %v934 = vld [vmem:[%s9 + $0x138] sm:$0xff]
    %v935 = vld [vmem:[%s9 + $0x140] sm:$0xff]
    %v936 = vld [vmem:[%s9 + $0x148] sm:$0xff]
    %v937 = vld [vmem:[%s9 + $0x150] sm:$0xff]
    %v938 = vld [vmem:[%s9 + $0x158] sm:$0xff]
    %v939 = vld [vmem:[%s9 + $0x160] sm:$0xff]
    %v940 = vld [vmem:[%s9 + $0x168] sm:$0xff]
    %v941 = vld [vmem:[%s9 + $0x170] sm:$0xff]
    %v942 = vld [vmem:[%s9 + $0x178] sm:$0xff]
    %v943 = vld [vmem:[%s9 + $0x180] sm:$0xff]
    %v944 = vld [vmem:[%s9 + $0x188] sm:$0xff]
    %v945 = vld [vmem:[%s9 + $0x190] sm:$0xff]
    %v946 = vld [vmem:[%s9 + $0x198] sm:$0xff]
    %v947 = vld [vmem:[%s9 + $0x1a0] sm:$0xff]
    %v948 = vld [vmem:[%s9 + $0x1a8] sm:$0xff]
    %v949 = vld [vmem:[%s9 + $0x1b0] sm:$0xff]
    %v950 = vld [vmem:[%s9 + $0x1b8] sm:$0xff]
    %v951 = vld [vmem:[%s9 + $0x1c0] sm:$0xff]
    %v952 = vld [vmem:[%s9 + $0x1c8] sm:$0xff]
    %v953 = vld [vmem:[%s9 + $0x1d0] sm:$0xff]
    %v954 = vld [vmem:[%s9 + $0x1d8] sm:$0xff]
    %v955 = vld [vmem:[%s9 + $0x1e0] sm:$0xff]
    %v956 = vld [vmem:[%s9 + $0x1e8] sm:$0xff]
    %v957 = vld [vmem:[%s9 + $0x1f0] sm:$0xff]
    %v958 = vld [vmem:[%s9 + $0x1f8] sm:$0xff]
    %v959 = vld [vmem:[%s10] sm:$0x3]
    %v961 = vlaneseq
    %v962 = vshrl.u32 %v961, 7
    %v963 = vsub.s32 0, %v962
    %v964 = vrot.slane %v959, %v963
    %v965 = vlaneseq
    %v966 = vshrl.u32 %v965, 7
    %v967 = vsub.s32 1, %v966
    %v968 = vrot.slane %v959, %v967
    %971 = vmatprep.subr.mxu0 %v896
    %972 = vmatpush1.msra.mxu0 %v895
    %973 = vmatprep.subr.mxu0 %v898
    %974 = vmatpush1.msra.mxu0 %v897
    %975 = vmatprep.subr.mxu0 %v900
    %976 = vmatpush1.msra.mxu0 %v899
    %977 = vmatprep.subr.mxu0 %v902
    %978 = vmatpush1.msra.mxu0 %v901
    %979 = vmatprep.subr.mxu0 %v904
    %980 = vmatpush1.msra.mxu0 %v903
    %981 = vmatprep.subr.mxu0 %v906
    %982 = vmatpush1.msra.mxu0 %v905
    %983 = vmatprep.subr.mxu0 %v908
    %984 = vmatpush1.msra.mxu0 %v907
    %985 = vmatprep.subr.mxu0 %v910
    %986 = vmatpush1.msra.mxu0 %v909
    %987 = vmatprep.subr.mxu0 %v912
    %988 = vmatpush1.msra.mxu0 %v911
    %989 = vmatprep.subr.mxu0 %v914
    %990 = vmatpush1.msra.mxu0 %v913
    %991 = vmatprep.subr.mxu0 %v916
    %992 = vmatpush1.msra.mxu0 %v915
    %993 = vmatprep.subr.mxu0 %v918
    %994 = vmatpush1.msra.mxu0 %v917
    %995 = vmatprep.subr.mxu0 %v920
    %996 = vmatpush1.msra.mxu0 %v919
    %997 = vmatprep.subr.mxu0 %v922
    %998 = vmatpush1.msra.mxu0 %v921
    %999 = vmatprep.subr.mxu0 %v924
    %1000 = vmatpush1.msra.mxu0 %v923
    %1001 = vmatprep.subr.mxu0 %v926
    %1002 = vmatpush1.msra.mxu0 %v925
    %1003 = vmatprep.subr.mxu0 %v928
    %1004 = vmatpush1.msra.mxu0 %v927
    %1005 = vmatprep.subr.mxu0 %v930
    %1006 = vmatpush1.msra.mxu0 %v929
    %1007 = vmatprep.subr.mxu0 %v932
    %1008 = vmatpush1.msra.mxu0 %v931
    %1009 = vmatprep.subr.mxu0 %v934
    %1010 = vmatpush1.msra.mxu0 %v933
    %1011 = vmatprep.subr.mxu0 %v936
    %1012 = vmatpush1.msra.mxu0 %v935
    %1013 = vmatprep.subr.mxu0 %v938
    %1014 = vmatpush1.msra.mxu0 %v937
    %1015 = vmatprep.subr.mxu0 %v940
    %1016 = vmatpush1.msra.mxu0 %v939
    %1017 = vmatprep.subr.mxu0 %v942
    %1018 = vmatpush1.msra.mxu0 %v941
    %1019 = vmatprep.subr.mxu0 %v944
    %1020 = vmatpush1.msra.mxu0 %v943
    %1021 = vmatprep.subr.mxu0 %v946
    %1022 = vmatpush1.msra.mxu0 %v945
    %1023 = vmatprep.subr.mxu0 %v948
    %1024 = vmatpush1.msra.mxu0 %v947
    %1025 = vmatprep.subr.mxu0 %v950
    %1026 = vmatpush1.msra.mxu0 %v949
    %1027 = vmatprep.subr.mxu0 %v952
    %1028 = vmatpush1.msra.mxu0 %v951
    %1029 = vmatprep.subr.mxu0 %v954
    %1030 = vmatpush1.msra.mxu0 %v953
    %1031 = vmatprep.subr.mxu0 %v956
    %1032 = vmatpush1.msra.mxu0 %v955
    %1033 = vmatprep.subr.mxu0 %v958
    %1034 = vmatpush1.msra.mxu0 %v957
    %1035 = vmatprep.mubr.f32.mxu0 %v803
    %1036 = vmatmul.mubr.f32.gmra.mrb[0].mxu0 %v801
    %v1037 = vpop.f32.mrb[0].mxu0
    %v1038 = vadd.f32 %v964, %v1037
    %v1039 = vpop.f32.mrb[0].mxu0
    %v1040 = vadd.f32 %v968, %v1039
    %1041 = vmatprep.mubr.f32.mxu0 %v809
    %1042 = vmatmul.mubr.f32.gmra.mrb[0].mxu0 %v807
    %v1043 = vpop.f32.mrb[0].mxu0
    %v1044 = vadd.f32 %v964, %v1043
    %v1045 = vpop.f32.mrb[0].mxu0
    %v1046 = vadd.f32 %v968, %v1045
    %1047 = vmatprep.mubr.f32.mxu0 %v815
    %1048 = vmatmul.mubr.f32.gmra.mrb[0].mxu0 %v813
    %v1049 = vpop.f32.mrb[0].mxu0
    %v1050 = vadd.f32 %v964, %v1049
    %v1051 = vpop.f32.mrb[0].mxu0
    %v1052 = vadd.f32 %v968, %v1051
    %1053 = vmatprep.mubr.f32.mxu0 %v821
    %1054 = vmatmul.mubr.f32.gmra.mrb[0].mxu0 %v819
    %v1055 = vpop.f32.mrb[0].mxu0
    %v1056 = vadd.f32 %v964, %v1055
    %v1057 = vpop.f32.mrb[0].mxu0
    %v1058 = vadd.f32 %v968, %v1057
    %1059 = vmatprep.mubr.f32.mxu0 %v827
    %1060 = vmatmul.mubr.f32.gmra.mrb[0].mxu0 %v825
    %v1061 = vpop.f32.mrb[0].mxu0
    %v1062 = vadd.f32 %v964, %v1061
    %v1063 = vpop.f32.mrb[0].mxu0
    %v1064 = vadd.f32 %v968, %v1063
    %1065 = vmatprep.mubr.f32.mxu0 %v833
    %1066 = vmatmul.mubr.f32.gmra.mrb[0].mxu0 %v831
    %v1067 = vpop.f32.mrb[0].mxu0
    %v1068 = vadd.f32 %v964, %v1067
    %v1069 = vpop.f32.mrb[0].mxu0
    %v1070 = vadd.f32 %v968, %v1069
    %1071 = vmatprep.mubr.f32.mxu0 %v839
    %1072 = vmatmul.mubr.f32.gmra.mrb[0].mxu0 %v837
    %v1073 = vpop.f32.mrb[0].mxu0
    %v1074 = vadd.f32 %v964, %v1073
    %v1075 = vpop.f32.mrb[0].mxu0
    %v1076 = vadd.f32 %v968, %v1075
    %1077 = vmatprep.mubr.f32.mxu0 %v845
    %1078 = vmatmul.mubr.f32.gmra.mrb[0].mxu0 %v843
    %v1079 = vpop.f32.mrb[0].mxu0
    %v1080 = vadd.f32 %v964, %v1079
    %v1081 = vpop.f32.mrb[0].mxu0
    %v1082 = vadd.f32 %v968, %v1081
    %1083 = vmatprep.mubr.f32.mxu0 %v851
    %1084 = vmatmul.mubr.f32.gmra.mrb[0].mxu0 %v849
    %v1085 = vpop.f32.mrb[0].mxu0
    %v1086 = vadd.f32 %v964, %v1085
    %v1087 = vpop.f32.mrb[0].mxu0
    %v1088 = vadd.f32 %v968, %v1087
    %1089 = vmatprep.mubr.f32.mxu0 %v857
    %1090 = vmatmul.mubr.f32.gmra.mrb[0].mxu0 %v855
    %v1091 = vpop.f32.mrb[0].mxu0
    %v1092 = vadd.f32 %v964, %v1091
    %v1093 = vpop.f32.mrb[0].mxu0
    %v1094 = vadd.f32 %v968, %v1093
    %1095 = vmatprep.mubr.f32.mxu0 %v863
    %1096 = vmatmul.mubr.f32.gmra.mrb[0].mxu0 %v861
    %v1097 = vpop.f32.mrb[0].mxu0
    %v1098 = vadd.f32 %v964, %v1097
    %v1099 = vpop.f32.mrb[0].mxu0
    %v1100 = vadd.f32 %v968, %v1099
    %1101 = vmatprep.mubr.f32.mxu0 %v869
    %1102 = vmatmul.mubr.f32.gmra.mrb[0].mxu0 %v867
    %v1103 = vpop.f32.mrb[0].mxu0
    %v1104 = vadd.f32 %v964, %v1103
    %v1105 = vpop.f32.mrb[0].mxu0
    %v1106 = vadd.f32 %v968, %v1105
    %1107 = vmatprep.mubr.f32.mxu0 %v875
    %1108 = vmatmul.mubr.f32.gmra.mrb[0].mxu0 %v873
    %v1109 = vpop.f32.mrb[0].mxu0
    %v1110 = vadd.f32 %v964, %v1109
    %v1111 = vpop.f32.mrb[0].mxu0
    %v1112 = vadd.f32 %v968, %v1111
    %1113 = vmatprep.mubr.f32.mxu0 %v881
    %1114 = vmatmul.mubr.f32.gmra.mrb[0].mxu0 %v879
    %v1115 = vpop.f32.mrb[0].mxu0
    %v1116 = vadd.f32 %v964, %v1115
    %v1117 = vpop.f32.mrb[0].mxu0
    %v1118 = vadd.f32 %v968, %v1117
    %1119 = vmatprep.mubr.f32.mxu0 %v887
    %1120 = vmatmul.mubr.f32.gmra.mrb[0].mxu0 %v885
    %v1121 = vpop.f32.mrb[0].mxu0
    %v1122 = vadd.f32 %v964, %v1121
    %v1123 = vpop.f32.mrb[0].mxu0
    %v1124 = vadd.f32 %v968, %v1123
    %1125 = vmatprep.mubr.f32.mxu0 %v893
    %1126 = vmatmul.mubr.f32.gmra.mrb[0].mxu0 %v891
    %v1127 = vpop.f32.mrb[0].mxu0
    %v1128 = vadd.f32 %v964, %v1127
    %v1129 = vpop.f32.mrb[0].mxu0
    %v1130 = vadd.f32 %v968, %v1129
    %1131 = vdwg.mxu0
    %v1132 = vld [vmem:[%s11] sm:$0xff]
    %v1133 = vld [vmem:[%s11 + $0x8] sm:$0xff]
    %v1134 = vld [vmem:[%s11 + $0x10] sm:$0xff]
    %v1135 = vld [vmem:[%s11 + $0x18] sm:$0xff]
    %v1136 = vld [vmem:[%s11 + $0x20] sm:$0xff]
    %v1137 = vld [vmem:[%s11 + $0x28] sm:$0xff]
    %v1138 = vld [vmem:[%s11 + $0x30] sm:$0xff]
    %v1139 = vld [vmem:[%s11 + $0x38] sm:$0xff]
    %v1140 = vld [vmem:[%s11 + $0x40] sm:$0xff]
    %v1141 = vld [vmem:[%s11 + $0x48] sm:$0xff]
    %v1142 = vld [vmem:[%s11 + $0x50] sm:$0xff]
    %v1143 = vld [vmem:[%s11 + $0x58] sm:$0xff]
    %v1144 = vld [vmem:[%s11 + $0x60] sm:$0xff]
    %v1145 = vld [vmem:[%s11 + $0x68] sm:$0xff]
    %v1146 = vld [vmem:[%s11 + $0x70] sm:$0xff]
    %v1147 = vld [vmem:[%s11 + $0x78] sm:$0xff]
    %v1148 = vld [vmem:[%s11 + $0x80] sm:$0xff]
    %v1149 = vld [vmem:[%s11 + $0x88] sm:$0xff]
    %v1150 = vld [vmem:[%s11 + $0x90] sm:$0xff]
    %v1151 = vld [vmem:[%s11 + $0x98] sm:$0xff]
    %v1152 = vld [vmem:[%s11 + $0xa0] sm:$0xff]
    %v1153 = vld [vmem:[%s11 + $0xa8] sm:$0xff]
    %v1154 = vld [vmem:[%s11 + $0xb0] sm:$0xff]
    %v1155 = vld [vmem:[%s11 + $0xb8] sm:$0xff]
    %v1156 = vld [vmem:[%s11 + $0xc0] sm:$0xff]
    %v1157 = vld [vmem:[%s11 + $0xc8] sm:$0xff]
    %v1158 = vld [vmem:[%s11 + $0xd0] sm:$0xff]
    %v1159 = vld [vmem:[%s11 + $0xd8] sm:$0xff]
    %v1160 = vld [vmem:[%s11 + $0xe0] sm:$0xff]
    %v1161 = vld [vmem:[%s11 + $0xe8] sm:$0xff]
    %v1162 = vld [vmem:[%s11 + $0xf0] sm:$0xff]
    %v1163 = vld [vmem:[%s11 + $0xf8] sm:$0xff]
    %v1164 = vld [vmem:[%s11 + $0x100] sm:$0xff]
    %v1165 = vld [vmem:[%s11 + $0x108] sm:$0xff]
    %v1166 = vld [vmem:[%s11 + $0x110] sm:$0xff]
    %v1167 = vld [vmem:[%s11 + $0x118] sm:$0xff]
    %v1168 = vld [vmem:[%s11 + $0x120] sm:$0xff]
    %v1169 = vld [vmem:[%s11 + $0x128] sm:$0xff]
    %v1170 = vld [vmem:[%s11 + $0x130] sm:$0xff]
    %v1171 = vld [vmem:[%s11 + $0x138] sm:$0xff]
    %v1172 = vld [vmem:[%s11 + $0x140] sm:$0xff]
    %v1173 = vld [vmem:[%s11 + $0x148] sm:$0xff]
    %v1174 = vld [vmem:[%s11 + $0x150] sm:$0xff]
    %v1175 = vld [vmem:[%s11 + $0x158] sm:$0xff]
    %v1176 = vld [vmem:[%s11 + $0x160] sm:$0xff]
    %v1177 = vld [vmem:[%s11 + $0x168] sm:$0xff]
    %v1178 = vld [vmem:[%s11 + $0x170] sm:$0xff]
    %v1179 = vld [vmem:[%s11 + $0x178] sm:$0xff]
    %v1180 = vld [vmem:[%s11 + $0x180] sm:$0xff]
    %v1181 = vld [vmem:[%s11 + $0x188] sm:$0xff]
    %v1182 = vld [vmem:[%s11 + $0x190] sm:$0xff]
    %v1183 = vld [vmem:[%s11 + $0x198] sm:$0xff]
    %v1184 = vld [vmem:[%s11 + $0x1a0] sm:$0xff]
    %v1185 = vld [vmem:[%s11 + $0x1a8] sm:$0xff]
    %v1186 = vld [vmem:[%s11 + $0x1b0] sm:$0xff]
    %v1187 = vld [vmem:[%s11 + $0x1b8] sm:$0xff]
    %v1188 = vld [vmem:[%s11 + $0x1c0] sm:$0xff]
    %v1189 = vld [vmem:[%s11 + $0x1c8] sm:$0xff]
    %v1190 = vld [vmem:[%s11 + $0x1d0] sm:$0xff]
    %v1191 = vld [vmem:[%s11 + $0x1d8] sm:$0xff]
    %v1192 = vld [vmem:[%s11 + $0x1e0] sm:$0xff]
    %v1193 = vld [vmem:[%s11 + $0x1e8] sm:$0xff]
    %v1194 = vld [vmem:[%s11 + $0x1f0] sm:$0xff]
    %v1195 = vld [vmem:[%s11 + $0x1f8] sm:$0xff]
    %v1196 = vld [vmem:[%s12] sm:$0x3]
    %v1198 = vlaneseq
    %v1199 = vshrl.u32 %v1198, 7
    %v1200 = vsub.s32 0, %v1199
    %v1201 = vrot.slane %v1196, %v1200
    %v1202 = vlaneseq
    %v1203 = vshrl.u32 %v1202, 7
    %v1204 = vsub.s32 1, %v1203
    %v1205 = vrot.slane %v1196, %v1204
    %1208 = vmatprep.subr.mxu0 %v1133
    %1209 = vmatpush1.msra.mxu0 %v1132
    %1210 = vmatprep.subr.mxu0 %v1135
    %1211 = vmatpush1.msra.mxu0 %v1134
    %1212 = vmatprep.subr.mxu0 %v1137
    %1213 = vmatpush1.msra.mxu0 %v1136
    %1214 = vmatprep.subr.mxu0 %v1139
    %1215 = vmatpush1.msra.mxu0 %v1138
    %1216 = vmatprep.subr.mxu0 %v1141
    %1217 = vmatpush1.msra.mxu0 %v1140
    %1218 = vmatprep.subr.mxu0 %v1143
    %1219 = vmatpush1.msra.mxu0 %v1142
    %1220 = vmatprep.subr.mxu0 %v1145
    %1221 = vmatpush1.msra.mxu0 %v1144
    %1222 = vmatprep.subr.mxu0 %v1147
    %1223 = vmatpush1.msra.mxu0 %v1146
    %1224 = vmatprep.subr.mxu0 %v1149
    %1225 = vmatpush1.msra.mxu0 %v1148
    %1226 = vmatprep.subr.mxu0 %v1151
    %1227 = vmatpush1.msra.mxu0 %v1150
    %1228 = vmatprep.subr.mxu0 %v1153
    %1229 = vmatpush1.msra.mxu0 %v1152
    %1230 = vmatprep.subr.mxu0 %v1155
    %1231 = vmatpush1.msra.mxu0 %v1154
    %1232 = vmatprep.subr.mxu0 %v1157
    %1233 = vmatpush1.msra.mxu0 %v1156
    %1234 = vmatprep.subr.mxu0 %v1159
    %1235 = vmatpush1.msra.mxu0 %v1158
    %1236 = vmatprep.subr.mxu0 %v1161
    %1237 = vmatpush1.msra.mxu0 %v1160
    %1238 = vmatprep.subr.mxu0 %v1163
    %1239 = vmatpush1.msra.mxu0 %v1162
    %1240 = vmatprep.subr.mxu0 %v1165
    %1241 = vmatpush1.msra.mxu0 %v1164
    %1242 = vmatprep.subr.mxu0 %v1167
    %1243 = vmatpush1.msra.mxu0 %v1166
    %1244 = vmatprep.subr.mxu0 %v1169
    %1245 = vmatpush1.msra.mxu0 %v1168
    %1246 = vmatprep.subr.mxu0 %v1171
    %1247 = vmatpush1.msra.mxu0 %v1170
    %1248 = vmatprep.subr.mxu0 %v1173
    %1249 = vmatpush1.msra.mxu0 %v1172
    %1250 = vmatprep.subr.mxu0 %v1175
    %1251 = vmatpush1.msra.mxu0 %v1174
    %1252 = vmatprep.subr.mxu0 %v1177
    %1253 = vmatpush1.msra.mxu0 %v1176
    %1254 = vmatprep.subr.mxu0 %v1179
    %1255 = vmatpush1.msra.mxu0 %v1178
    %1256 = vmatprep.subr.mxu0 %v1181
    %1257 = vmatpush1.msra.mxu0 %v1180
    %1258 = vmatprep.subr.mxu0 %v1183
    %1259 = vmatpush1.msra.mxu0 %v1182
    %1260 = vmatprep.subr.mxu0 %v1185
    %1261 = vmatpush1.msra.mxu0 %v1184
    %1262 = vmatprep.subr.mxu0 %v1187
    %1263 = vmatpush1.msra.mxu0 %v1186
    %1264 = vmatprep.subr.mxu0 %v1189
    %1265 = vmatpush1.msra.mxu0 %v1188
    %1266 = vmatprep.subr.mxu0 %v1191
    %1267 = vmatpush1.msra.mxu0 %v1190
    %1268 = vmatprep.subr.mxu0 %v1193
    %1269 = vmatpush1.msra.mxu0 %v1192
    %1270 = vmatprep.subr.mxu0 %v1195
    %1271 = vmatpush1.msra.mxu0 %v1194
    %1272 = vmatprep.mubr.f32.mxu0 %v1040
    %1273 = vmatmul.mubr.f32.gmra.mrb[0].mxu0 %v1038
    %v1274 = vpop.f32.mrb[0].mxu0
    %v1275 = vadd.f32 %v1201, %v1274
    %v1276 = vpop.f32.mrb[0].mxu0
    %v1277 = vadd.f32 %v1205, %v1276
    %1278 = vmatprep.mubr.f32.mxu0 %v1046
    %1279 = vmatmul.mubr.f32.gmra.mrb[0].mxu0 %v1044
    %v1280 = vpop.f32.mrb[0].mxu0
    %v1281 = vadd.f32 %v1201, %v1280
    %v1282 = vpop.f32.mrb[0].mxu0
    %v1283 = vadd.f32 %v1205, %v1282
    %1284 = vmatprep.mubr.f32.mxu0 %v1052
    %1285 = vmatmul.mubr.f32.gmra.mrb[0].mxu0 %v1050
    %v1286 = vpop.f32.mrb[0].mxu0
    %v1287 = vadd.f32 %v1201, %v1286
    %v1288 = vpop.f32.mrb[0].mxu0
    %v1289 = vadd.f32 %v1205, %v1288
    %1290 = vmatprep.mubr.f32.mxu0 %v1058
    %1291 = vmatmul.mubr.f32.gmra.mrb[0].mxu0 %v1056
    %v1292 = vpop.f32.mrb[0].mxu0
    %v1293 = vadd.f32 %v1201, %v1292
    %v1294 = vpop.f32.mrb[0].mxu0
    %v1295 = vadd.f32 %v1205, %v1294
    %1296 = vmatprep.mubr.f32.mxu0 %v1064
    %1297 = vmatmul.mubr.f32.gmra.mrb[0].mxu0 %v1062
    %v1298 = vpop.f32.mrb[0].mxu0
    %v1299 = vadd.f32 %v1201, %v1298
    %v1300 = vpop.f32.mrb[0].mxu0
    %v1301 = vadd.f32 %v1205, %v1300
    %1302 = vmatprep.mubr.f32.mxu0 %v1070
    %1303 = vmatmul.mubr.f32.gmra.mrb[0].mxu0 %v1068
    %v1304 = vpop.f32.mrb[0].mxu0
    %v1305 = vadd.f32 %v1201, %v1304
    %v1306 = vpop.f32.mrb[0].mxu0
    %v1307 = vadd.f32 %v1205, %v1306
    %1308 = vmatprep.mubr.f32.mxu0 %v1076
    %1309 = vmatmul.mubr.f32.gmra.mrb[0].mxu0 %v1074
    %v1310 = vpop.f32.mrb[0].mxu0
    %v1311 = vadd.f32 %v1201, %v1310
    %v1312 = vpop.f32.mrb[0].mxu0
    %v1313 = vadd.f32 %v1205, %v1312
    %1314 = vmatprep.mubr.f32.mxu0 %v1082
    %1315 = vmatmul.mubr.f32.gmra.mrb[0].mxu0 %v1080
    %v1316 = vpop.f32.mrb[0].mxu0
    %v1317 = vadd.f32 %v1201, %v1316
    %v1318 = vpop.f32.mrb[0].mxu0
    %v1319 = vadd.f32 %v1205, %v1318
    %1320 = vmatprep.mubr.f32.mxu0 %v1088
    %1321 = vmatmul.mubr.f32.gmra.mrb[0].mxu0 %v1086
    %v1322 = vpop.f32.mrb[0].mxu0
    %v1323 = vadd.f32 %v1201, %v1322
    %v1324 = vpop.f32.mrb[0].mxu0
    %v1325 = vadd.f32 %v1205, %v1324
    %1326 = vmatprep.mubr.f32.mxu0 %v1094
    %1327 = vmatmul.mubr.f32.gmra.mrb[0].mxu0 %v1092
    %v1328 = vpop.f32.mrb[0].mxu0
    %v1329 = vadd.f32 %v1201, %v1328
    %v1330 = vpop.f32.mrb[0].mxu0
    %v1331 = vadd.f32 %v1205, %v1330
    %1332 = vmatprep.mubr.f32.mxu0 %v1100
    %1333 = vmatmul.mubr.f32.gmra.mrb[0].mxu0 %v1098
    %v1334 = vpop.f32.mrb[0].mxu0
    %v1335 = vadd.f32 %v1201, %v1334
    %v1336 = vpop.f32.mrb[0].mxu0
    %v1337 = vadd.f32 %v1205, %v1336
    %1338 = vmatprep.mubr.f32.mxu0 %v1106
    %1339 = vmatmul.mubr.f32.gmra.mrb[0].mxu0 %v1104
    %v1340 = vpop.f32.mrb[0].mxu0
    %v1341 = vadd.f32 %v1201, %v1340
    %v1342 = vpop.f32.mrb[0].mxu0
    %v1343 = vadd.f32 %v1205, %v1342
    %1344 = vmatprep.mubr.f32.mxu0 %v1112
    %1345 = vmatmul.mubr.f32.gmra.mrb[0].mxu0 %v1110
    %v1346 = vpop.f32.mrb[0].mxu0
    %v1347 = vadd.f32 %v1201, %v1346
    %v1348 = vpop.f32.mrb[0].mxu0
    %v1349 = vadd.f32 %v1205, %v1348
    %1350 = vmatprep.mubr.f32.mxu0 %v1118
    %1351 = vmatmul.mubr.f32.gmra.mrb[0].mxu0 %v1116
    %v1352 = vpop.f32.mrb[0].mxu0
    %v1353 = vadd.f32 %v1201, %v1352
    %v1354 = vpop.f32.mrb[0].mxu0
    %v1355 = vadd.f32 %v1205, %v1354
    %1356 = vmatprep.mubr.f32.mxu0 %v1124
    %1357 = vmatmul.mubr.f32.gmra.mrb[0].mxu0 %v1122
    %v1358 = vpop.f32.mrb[0].mxu0
    %v1359 = vadd.f32 %v1201, %v1358
    %v1360 = vpop.f32.mrb[0].mxu0
    %v1361 = vadd.f32 %v1205, %v1360
    %1362 = vmatprep.mubr.f32.mxu0 %v1130
    %1363 = vmatmul.mubr.f32.gmra.mrb[0].mxu0 %v1128
    %v1364 = vpop.f32.mrb[0].mxu0
    %v1365 = vadd.f32 %v1201, %v1364
    %v1366 = vpop.f32.mrb[0].mxu0
    %v1367 = vadd.f32 %v1205, %v1366
    %1368 = vdwg.mxu0
    %1369 = vst [vmem:[#allocation2] sm:$0xff] %v1275
    %1370 = vst [vmem:[#allocation2 + $0x8] sm:$0xff] %v1277
    %1371 = vst [vmem:[#allocation2 + $0x10] sm:$0xff] %v1281
    %1372 = vst [vmem:[#allocation2 + $0x18] sm:$0xff] %v1283
    %1373 = vst [vmem:[#allocation2 + $0x20] sm:$0xff] %v1287
    %1374 = vst [vmem:[#allocation2 + $0x28] sm:$0xff] %v1289
    %1375 = vst [vmem:[#allocation2 + $0x30] sm:$0xff] %v1293
    %1376 = vst [vmem:[#allocation2 + $0x38] sm:$0xff] %v1295
    %1377 = vst [vmem:[#allocation2 + $0x40] sm:$0xff] %v1299
    %1378 = vst [vmem:[#allocation2 + $0x48] sm:$0xff] %v1301
    %1379 = vst [vmem:[#allocation2 + $0x50] sm:$0xff] %v1305
    %1380 = vst [vmem:[#allocation2 + $0x58] sm:$0xff] %v1307
    %1381 = vst [vmem:[#allocation2 + $0x60] sm:$0xff] %v1311
    %1382 = vst [vmem:[#allocation2 + $0x68] sm:$0xff] %v1313
    %1383 = vst [vmem:[#allocation2 + $0x70] sm:$0xff] %v1317
    %1384 = vst [vmem:[#allocation2 + $0x78] sm:$0xff] %v1319
    %1385 = vst [vmem:[#allocation2 + $0x80] sm:$0xff] %v1323
    %1386 = vst [vmem:[#allocation2 + $0x88] sm:$0xff] %v1325
    %1387 = vst [vmem:[#allocation2 + $0x90] sm:$0xff] %v1329
    %1388 = vst [vmem:[#allocation2 + $0x98] sm:$0xff] %v1331
    %1389 = vst [vmem:[#allocation2 + $0xa0] sm:$0xff] %v1335
    %1390 = vst [vmem:[#allocation2 + $0xa8] sm:$0xff] %v1337
    %1391 = vst [vmem:[#allocation2 + $0xb0] sm:$0xff] %v1341
    %1392 = vst [vmem:[#allocation2 + $0xb8] sm:$0xff] %v1343
    %1393 = vst [vmem:[#allocation2 + $0xc0] sm:$0xff] %v1347
    %1394 = vst [vmem:[#allocation2 + $0xc8] sm:$0xff] %v1349
    %1395 = vst [vmem:[#allocation2 + $0xd0] sm:$0xff] %v1353
    %1396 = vst [vmem:[#allocation2 + $0xd8] sm:$0xff] %v1355
    %1397 = vst [vmem:[#allocation2 + $0xe0] sm:$0xff] %v1359
    %1398 = vst [vmem:[#allocation2 + $0xe8] sm:$0xff] %v1361
    %1399 = vst [vmem:[#allocation2 + $0xf0] sm:$0xff] %v1365
    %1400 = vst [vmem:[#allocation2 + $0xf8] sm:$0xff] %v1367
    %v1401 = vld [vmem:[%s13] sm:$0xff]
    %v1402 = vld [vmem:[%s13 + $0x8] sm:$0xff]
    %v1403 = vld [vmem:[%s13 + $0x10] sm:$0xff]
    %v1404 = vld [vmem:[%s13 + $0x18] sm:$0xff]
    %v1405 = vld [vmem:[%s13 + $0x20] sm:$0xff]
    %v1406 = vld [vmem:[%s13 + $0x28] sm:$0xff]
    %v1407 = vld [vmem:[%s13 + $0x30] sm:$0xff]
    %v1408 = vld [vmem:[%s13 + $0x38] sm:$0xff]
    %v1409 = vld [vmem:[%s13 + $0x40] sm:$0xff]
    %v1410 = vld [vmem:[%s13 + $0x48] sm:$0xff]
    %v1411 = vld [vmem:[%s13 + $0x50] sm:$0xff]
    %v1412 = vld [vmem:[%s13 + $0x58] sm:$0xff]
    %v1413 = vld [vmem:[%s13 + $0x60] sm:$0xff]
    %v1414 = vld [vmem:[%s13 + $0x68] sm:$0xff]
    %v1415 = vld [vmem:[%s13 + $0x70] sm:$0xff]
    %v1416 = vld [vmem:[%s13 + $0x78] sm:$0xff]
    %v1417 = vld [vmem:[%s13 + $0x80] sm:$0xff]
    %v1418 = vld [vmem:[%s13 + $0x88] sm:$0xff]
    %v1419 = vld [vmem:[%s13 + $0x90] sm:$0xff]
    %v1420 = vld [vmem:[%s13 + $0x98] sm:$0xff]
    %v1421 = vld [vmem:[%s13 + $0xa0] sm:$0xff]
    %v1422 = vld [vmem:[%s13 + $0xa8] sm:$0xff]
    %v1423 = vld [vmem:[%s13 + $0xb0] sm:$0xff]
    %v1424 = vld [vmem:[%s13 + $0xb8] sm:$0xff]
    %v1425 = vld [vmem:[%s13 + $0xc0] sm:$0xff]
    %v1426 = vld [vmem:[%s13 + $0xc8] sm:$0xff]
    %v1427 = vld [vmem:[%s13 + $0xd0] sm:$0xff]
    %v1428 = vld [vmem:[%s13 + $0xd8] sm:$0xff]
    %v1429 = vld [vmem:[%s13 + $0xe0] sm:$0xff]
    %v1430 = vld [vmem:[%s13 + $0xe8] sm:$0xff]
    %v1431 = vld [vmem:[%s13 + $0xf0] sm:$0xff]
    %v1432 = vld [vmem:[%s13 + $0xf8] sm:$0xff]
    %v1433 = vld [vmem:[%s13 + $0x100] sm:$0xff]
    %v1434 = vld [vmem:[%s13 + $0x108] sm:$0xff]
    %v1435 = vld [vmem:[%s13 + $0x110] sm:$0xff]
    %v1436 = vld [vmem:[%s13 + $0x118] sm:$0xff]
    %v1437 = vld [vmem:[%s13 + $0x120] sm:$0xff]
    %v1438 = vld [vmem:[%s13 + $0x128] sm:$0xff]
    %v1439 = vld [vmem:[%s13 + $0x130] sm:$0xff]
    %v1440 = vld [vmem:[%s13 + $0x138] sm:$0xff]
    %v1441 = vld [vmem:[%s13 + $0x140] sm:$0xff]
    %v1442 = vld [vmem:[%s13 + $0x148] sm:$0xff]
    %v1443 = vld [vmem:[%s13 + $0x150] sm:$0xff]
    %v1444 = vld [vmem:[%s13 + $0x158] sm:$0xff]
    %v1445 = vld [vmem:[%s13 + $0x160] sm:$0xff]
    %v1446 = vld [vmem:[%s13 + $0x168] sm:$0xff]
    %v1447 = vld [vmem:[%s13 + $0x170] sm:$0xff]
    %v1448 = vld [vmem:[%s13 + $0x178] sm:$0xff]
    %v1449 = vld [vmem:[%s13 + $0x180] sm:$0xff]
    %v1450 = vld [vmem:[%s13 + $0x188] sm:$0xff]
    %v1451 = vld [vmem:[%s13 + $0x190] sm:$0xff]
    %v1452 = vld [vmem:[%s13 + $0x198] sm:$0xff]
    %v1453 = vld [vmem:[%s13 + $0x1a0] sm:$0xff]
    %v1454 = vld [vmem:[%s13 + $0x1a8] sm:$0xff]
    %v1455 = vld [vmem:[%s13 + $0x1b0] sm:$0xff]
    %v1456 = vld [vmem:[%s13 + $0x1b8] sm:$0xff]
    %v1457 = vld [vmem:[%s13 + $0x1c0] sm:$0xff]
    %v1458 = vld [vmem:[%s13 + $0x1c8] sm:$0xff]
    %v1459 = vld [vmem:[%s13 + $0x1d0] sm:$0xff]
    %v1460 = vld [vmem:[%s13 + $0x1d8] sm:$0xff]
    %v1461 = vld [vmem:[%s13 + $0x1e0] sm:$0xff]
    %v1462 = vld [vmem:[%s13 + $0x1e8] sm:$0xff]
    %v1463 = vld [vmem:[%s13 + $0x1f0] sm:$0xff]
    %v1464 = vld [vmem:[%s13 + $0x1f8] sm:$0xff]
    %v1465 = vld [vmem:[%s13 + $0x200] sm:$0xff]
    %v1466 = vld [vmem:[%s13 + $0x208] sm:$0xff]
    %v1467 = vld [vmem:[%s13 + $0x210] sm:$0xff]
    %v1468 = vld [vmem:[%s13 + $0x218] sm:$0xff]
    %v1469 = vld [vmem:[%s13 + $0x220] sm:$0xff]
    %v1470 = vld [vmem:[%s13 + $0x228] sm:$0xff]
    %v1471 = vld [vmem:[%s13 + $0x230] sm:$0xff]
    %v1472 = vld [vmem:[%s13 + $0x238] sm:$0xff]
    %v1473 = vld [vmem:[%s13 + $0x240] sm:$0xff]
    %v1474 = vld [vmem:[%s13 + $0x248] sm:$0xff]
    %v1475 = vld [vmem:[%s13 + $0x250] sm:$0xff]
    %v1476 = vld [vmem:[%s13 + $0x258] sm:$0xff]
    %v1477 = vld [vmem:[%s13 + $0x260] sm:$0xff]
    %v1478 = vld [vmem:[%s13 + $0x268] sm:$0xff]
    %v1479 = vld [vmem:[%s13 + $0x270] sm:$0xff]
    %v1480 = vld [vmem:[%s13 + $0x278] sm:$0xff]
    %v1481 = vld [vmem:[%s13 + $0x280] sm:$0xff]
    %v1482 = vld [vmem:[%s13 + $0x288] sm:$0xff]
    %v1483 = vld [vmem:[%s13 + $0x290] sm:$0xff]
    %v1484 = vld [vmem:[%s13 + $0x298] sm:$0xff]
    %v1485 = vld [vmem:[%s13 + $0x2a0] sm:$0xff]
    %v1486 = vld [vmem:[%s13 + $0x2a8] sm:$0xff]
    %v1487 = vld [vmem:[%s13 + $0x2b0] sm:$0xff]
    %v1488 = vld [vmem:[%s13 + $0x2b8] sm:$0xff]
    %v1489 = vld [vmem:[%s13 + $0x2c0] sm:$0xff]
    %v1490 = vld [vmem:[%s13 + $0x2c8] sm:$0xff]
    %v1491 = vld [vmem:[%s13 + $0x2d0] sm:$0xff]
    %v1492 = vld [vmem:[%s13 + $0x2d8] sm:$0xff]
    %v1493 = vld [vmem:[%s13 + $0x2e0] sm:$0xff]
    %v1494 = vld [vmem:[%s13 + $0x2e8] sm:$0xff]
    %v1495 = vld [vmem:[%s13 + $0x2f0] sm:$0xff]
    %v1496 = vld [vmem:[%s13 + $0x2f8] sm:$0xff]
    %v1497 = vld [vmem:[%s13 + $0x300] sm:$0xff]
    %v1498 = vld [vmem:[%s13 + $0x308] sm:$0xff]
    %v1499 = vld [vmem:[%s13 + $0x310] sm:$0xff]
    %v1500 = vld [vmem:[%s13 + $0x318] sm:$0xff]
    %v1501 = vld [vmem:[%s13 + $0x320] sm:$0xff]
    %v1502 = vld [vmem:[%s13 + $0x328] sm:$0xff]
    %v1503 = vld [vmem:[%s13 + $0x330] sm:$0xff]
    %v1504 = vld [vmem:[%s13 + $0x338] sm:$0xff]
    %v1505 = vld [vmem:[%s13 + $0x340] sm:$0xff]
    %v1506 = vld [vmem:[%s13 + $0x348] sm:$0xff]
    %v1507 = vld [vmem:[%s13 + $0x350] sm:$0xff]
    %v1508 = vld [vmem:[%s13 + $0x358] sm:$0xff]
    %v1509 = vld [vmem:[%s13 + $0x360] sm:$0xff]
    %v1510 = vld [vmem:[%s13 + $0x368] sm:$0xff]
    %v1511 = vld [vmem:[%s13 + $0x370] sm:$0xff]
    %v1512 = vld [vmem:[%s13 + $0x378] sm:$0xff]
    %v1513 = vld [vmem:[%s13 + $0x380] sm:$0xff]
    %v1514 = vld [vmem:[%s13 + $0x388] sm:$0xff]
    %v1515 = vld [vmem:[%s13 + $0x390] sm:$0xff]
    %v1516 = vld [vmem:[%s13 + $0x398] sm:$0xff]
    %v1517 = vld [vmem:[%s13 + $0x3a0] sm:$0xff]
    %v1518 = vld [vmem:[%s13 + $0x3a8] sm:$0xff]
    %v1519 = vld [vmem:[%s13 + $0x3b0] sm:$0xff]
    %v1520 = vld [vmem:[%s13 + $0x3b8] sm:$0xff]
    %v1521 = vld [vmem:[%s13 + $0x3c0] sm:$0xff]
    %v1522 = vld [vmem:[%s13 + $0x3c8] sm:$0xff]
    %v1523 = vld [vmem:[%s13 + $0x3d0] sm:$0xff]
    %v1524 = vld [vmem:[%s13 + $0x3d8] sm:$0xff]
    %v1525 = vld [vmem:[%s13 + $0x3e0] sm:$0xff]
    %v1526 = vld [vmem:[%s13 + $0x3e8] sm:$0xff]
    %v1527 = vld [vmem:[%s13 + $0x3f0] sm:$0xff]
    %v1528 = vld [vmem:[%s13 + $0x3f8] sm:$0xff]
    %v1529 = vld [vmem:[%s14] sm:$0xf]
    %v1531 = vlaneseq
    %v1532 = vshrl.u32 %v1531, 7
    %v1533 = vsub.s32 0, %v1532
    %v1534 = vrot.slane %v1529, %v1533
    %v1535 = vlaneseq
    %v1536 = vshrl.u32 %v1535, 7
    %v1537 = vsub.s32 1, %v1536
    %v1538 = vrot.slane %v1529, %v1537
    %v1539 = vlaneseq
    %v1540 = vshrl.u32 %v1539, 7
    %v1541 = vsub.s32 2, %v1540
    %v1542 = vrot.slane %v1529, %v1541
    %v1543 = vlaneseq
    %v1544 = vshrl.u32 %v1543, 7
    %v1545 = vsub.s32 3, %v1544
    %v1546 = vrot.slane %v1529, %v1545
    %1551 = vmatprep.subr.mxu0 %v1402
    %1552 = vmatpush1.msra.mxu0 %v1401
    %1553 = vmatprep.subr.mxu0 %v1406
    %1554 = vmatpush1.msra.mxu0 %v1405
    %1555 = vmatprep.subr.mxu0 %v1410
    %1556 = vmatpush1.msra.mxu0 %v1409
    %1557 = vmatprep.subr.mxu0 %v1414
    %1558 = vmatpush1.msra.mxu0 %v1413
    %1559 = vmatprep.subr.mxu0 %v1418
    %1560 = vmatpush1.msra.mxu0 %v1417
    %1561 = vmatprep.subr.mxu0 %v1422
    %1562 = vmatpush1.msra.mxu0 %v1421
    %1563 = vmatprep.subr.mxu0 %v1426
    %1564 = vmatpush1.msra.mxu0 %v1425
    %1565 = vmatprep.subr.mxu0 %v1430
    %1566 = vmatpush1.msra.mxu0 %v1429
    %1567 = vmatprep.subr.mxu0 %v1434
    %1568 = vmatpush1.msra.mxu0 %v1433
    %1569 = vmatprep.subr.mxu0 %v1438
    %1570 = vmatpush1.msra.mxu0 %v1437
    %1571 = vmatprep.subr.mxu0 %v1442
    %1572 = vmatpush1.msra.mxu0 %v1441
    %1573 = vmatprep.subr.mxu0 %v1446
    %1574 = vmatpush1.msra.mxu0 %v1445
    %1575 = vmatprep.subr.mxu0 %v1450
    %1576 = vmatpush1.msra.mxu0 %v1449
    %1577 = vmatprep.subr.mxu0 %v1454
    %1578 = vmatpush1.msra.mxu0 %v1453
    %1579 = vmatprep.subr.mxu0 %v1458
    %1580 = vmatpush1.msra.mxu0 %v1457
    %1581 = vmatprep.subr.mxu0 %v1462
    %1582 = vmatpush1.msra.mxu0 %v1461
    %1583 = vmatprep.subr.mxu0 %v1466
    %1584 = vmatpush1.msra.mxu0 %v1465
    %1585 = vmatprep.subr.mxu0 %v1470
    %1586 = vmatpush1.msra.mxu0 %v1469
    %1587 = vmatprep.subr.mxu0 %v1474
    %1588 = vmatpush1.msra.mxu0 %v1473
    %1589 = vmatprep.subr.mxu0 %v1478
    %1590 = vmatpush1.msra.mxu0 %v1477
    %1591 = vmatprep.subr.mxu0 %v1482
    %1592 = vmatpush1.msra.mxu0 %v1481
    %1593 = vmatprep.subr.mxu0 %v1486
    %1594 = vmatpush1.msra.mxu0 %v1485
    %1595 = vmatprep.subr.mxu0 %v1490
    %1596 = vmatpush1.msra.mxu0 %v1489
    %1597 = vmatprep.subr.mxu0 %v1494
    %1598 = vmatpush1.msra.mxu0 %v1493
    %1599 = vmatprep.subr.mxu0 %v1498
    %1600 = vmatpush1.msra.mxu0 %v1497
    %1601 = vmatprep.subr.mxu0 %v1502
    %1602 = vmatpush1.msra.mxu0 %v1501
    %1603 = vmatprep.subr.mxu0 %v1506
    %1604 = vmatpush1.msra.mxu0 %v1505
    %1605 = vmatprep.subr.mxu0 %v1510
    %1606 = vmatpush1.msra.mxu0 %v1509
    %1607 = vmatprep.subr.mxu0 %v1514
    %1608 = vmatpush1.msra.mxu0 %v1513
    %1609 = vmatprep.subr.mxu0 %v1518
    %1610 = vmatpush1.msra.mxu0 %v1517
    %1611 = vmatprep.subr.mxu0 %v1522
    %1612 = vmatpush1.msra.mxu0 %v1521
    %1613 = vmatprep.subr.mxu0 %v1526
    %1614 = vmatpush1.msra.mxu0 %v1525
    %1615 = vmatprep.mubr.f32.mxu0 %v1277
    %1616 = vmatmul.mubr.f32.gmra.mrb[0].mxu0 %v1275
    %v1617 = vpop.f32.mrb[0].mxu0
    %v1618 = vadd.f32 %v1534, %v1617
    %v1619 = vpop.f32.mrb[0].mxu0
    %v1620 = vadd.f32 %v1538, %v1619
    %1621 = vmatprep.mubr.f32.mxu0 %v1283
    %1622 = vmatmul.mubr.f32.gmra.mrb[0].mxu0 %v1281
    %v1623 = vpop.f32.mrb[0].mxu0
    %v1624 = vadd.f32 %v1534, %v1623
    %v1625 = vpop.f32.mrb[0].mxu0
    %v1626 = vadd.f32 %v1538, %v1625
    %1627 = vmatprep.mubr.f32.mxu0 %v1289
    %1628 = vmatmul.mubr.f32.gmra.mrb[0].mxu0 %v1287
    %v1629 = vpop.f32.mrb[0].mxu0
    %v1630 = vadd.f32 %v1534, %v1629
    %v1631 = vpop.f32.mrb[0].mxu0
    %v1632 = vadd.f32 %v1538, %v1631
    %1633 = vmatprep.mubr.f32.mxu0 %v1295
    %1634 = vmatmul.mubr.f32.gmra.mrb[0].mxu0 %v1293
    %v1635 = vpop.f32.mrb[0].mxu0
    %v1636 = vadd.f32 %v1534, %v1635
    %v1637 = vpop.f32.mrb[0].mxu0
    %v1638 = vadd.f32 %v1538, %v1637
    %1639 = vmatprep.mubr.f32.mxu0 %v1301
    %1640 = vmatmul.mubr.f32.gmra.mrb[0].mxu0 %v1299
    %v1641 = vpop.f32.mrb[0].mxu0
    %v1642 = vadd.f32 %v1534, %v1641
    %v1643 = vpop.f32.mrb[0].mxu0
    %v1644 = vadd.f32 %v1538, %v1643
    %1645 = vmatprep.mubr.f32.mxu0 %v1307
    %1646 = vmatmul.mubr.f32.gmra.mrb[0].mxu0 %v1305
    %v1647 = vpop.f32.mrb[0].mxu0
    %v1648 = vadd.f32 %v1534, %v1647
    %v1649 = vpop.f32.mrb[0].mxu0
    %v1650 = vadd.f32 %v1538, %v1649
    %1651 = vmatprep.mubr.f32.mxu0 %v1313
    %1652 = vmatmul.mubr.f32.gmra.mrb[0].mxu0 %v1311
    %v1653 = vpop.f32.mrb[0].mxu0
    %v1654 = vadd.f32 %v1534, %v1653
    %v1655 = vpop.f32.mrb[0].mxu0
    %v1656 = vadd.f32 %v1538, %v1655
    %1657 = vmatprep.mubr.f32.mxu0 %v1319
    %1658 = vmatmul.mubr.f32.gmra.mrb[0].mxu0 %v1317
    %v1659 = vpop.f32.mrb[0].mxu0
    %v1660 = vadd.f32 %v1534, %v1659
    %v1661 = vpop.f32.mrb[0].mxu0
    %v1662 = vadd.f32 %v1538, %v1661
    %1663 = vmatprep.mubr.f32.mxu0 %v1325
    %1664 = vmatmul.mubr.f32.gmra.mrb[0].mxu0 %v1323
    %v1665 = vpop.f32.mrb[0].mxu0
    %v1666 = vadd.f32 %v1534, %v1665
    %v1667 = vpop.f32.mrb[0].mxu0
    %v1668 = vadd.f32 %v1538, %v1667
    %1669 = vmatprep.mubr.f32.mxu0 %v1331
    %1670 = vmatmul.mubr.f32.gmra.mrb[0].mxu0 %v1329
    %v1671 = vpop.f32.mrb[0].mxu0
    %v1672 = vadd.f32 %v1534, %v1671
    %v1673 = vpop.f32.mrb[0].mxu0
    %v1674 = vadd.f32 %v1538, %v1673
    %1675 = vmatprep.mubr.f32.mxu0 %v1337
    %1676 = vmatmul.mubr.f32.gmra.mrb[0].mxu0 %v1335
    %v1677 = vpop.f32.mrb[0].mxu0
    %v1678 = vadd.f32 %v1534, %v1677
    %v1679 = vpop.f32.mrb[0].mxu0
    %v1680 = vadd.f32 %v1538, %v1679
    %1681 = vmatprep.mubr.f32.mxu0 %v1343
    %1682 = vmatmul.mubr.f32.gmra.mrb[0].mxu0 %v1341
    %v1683 = vpop.f32.mrb[0].mxu0
    %v1684 = vadd.f32 %v1534, %v1683
    %v1685 = vpop.f32.mrb[0].mxu0
    %v1686 = vadd.f32 %v1538, %v1685
    %1687 = vmatprep.mubr.f32.mxu0 %v1349
    %1688 = vmatmul.mubr.f32.gmra.mrb[0].mxu0 %v1347
    %v1689 = vpop.f32.mrb[0].mxu0
    %v1690 = vadd.f32 %v1534, %v1689
    %v1691 = vpop.f32.mrb[0].mxu0
    %v1692 = vadd.f32 %v1538, %v1691
    %1693 = vmatprep.mubr.f32.mxu0 %v1355
    %1694 = vmatmul.mubr.f32.gmra.mrb[0].mxu0 %v1353
    %v1695 = vpop.f32.mrb[0].mxu0
    %v1696 = vadd.f32 %v1534, %v1695
    %v1697 = vpop.f32.mrb[0].mxu0
    %v1698 = vadd.f32 %v1538, %v1697
    %1699 = vmatprep.mubr.f32.mxu0 %v1361
    %1700 = vmatmul.mubr.f32.gmra.mrb[0].mxu0 %v1359
    %v1701 = vpop.f32.mrb[0].mxu0
    %v1702 = vadd.f32 %v1534, %v1701
    %v1703 = vpop.f32.mrb[0].mxu0
    %v1704 = vadd.f32 %v1538, %v1703
    %1705 = vmatprep.mubr.f32.mxu0 %v1367
    %1706 = vmatmul.mubr.f32.gmra.mrb[0].mxu0 %v1365
    %v1707 = vpop.f32.mrb[0].mxu0
    %v1708 = vadd.f32 %v1534, %v1707
    %v1709 = vpop.f32.mrb[0].mxu0
    %v1710 = vadd.f32 %v1538, %v1709
    %1711 = vdwg.mxu0
    %1712 = vmatprep.subr.mxu0 %v1404
    %1713 = vmatpush1.msra.mxu0 %v1403
    %1714 = vmatprep.subr.mxu0 %v1408
    %1715 = vmatpush1.msra.mxu0 %v1407
    %1716 = vmatprep.subr.mxu0 %v1412
    %1717 = vmatpush1.msra.mxu0 %v1411
    %1718 = vmatprep.subr.mxu0 %v1416
    %1719 = vmatpush1.msra.mxu0 %v1415
    %1720 = vmatprep.subr.mxu0 %v1420
    %1721 = vmatpush1.msra.mxu0 %v1419
    %1722 = vmatprep.subr.mxu0 %v1424
    %1723 = vmatpush1.msra.mxu0 %v1423
    %1724 = vmatprep.subr.mxu0 %v1428
    %1725 = vmatpush1.msra.mxu0 %v1427
    %1726 = vmatprep.subr.mxu0 %v1432
    %1727 = vmatpush1.msra.mxu0 %v1431
    %1728 = vmatprep.subr.mxu0 %v1436
    %1729 = vmatpush1.msra.mxu0 %v1435
    %1730 = vmatprep.subr.mxu0 %v1440
    %1731 = vmatpush1.msra.mxu0 %v1439
    %1732 = vmatprep.subr.mxu0 %v1444
    %1733 = vmatpush1.msra.mxu0 %v1443
    %1734 = vmatprep.subr.mxu0 %v1448
    %1735 = vmatpush1.msra.mxu0 %v1447
    %1736 = vmatprep.subr.mxu0 %v1452
    %1737 = vmatpush1.msra.mxu0 %v1451
    %1738 = vmatprep.subr.mxu0 %v1456
    %1739 = vmatpush1.msra.mxu0 %v1455
    %1740 = vmatprep.subr.mxu0 %v1460
    %1741 = vmatpush1.msra.mxu0 %v1459
    %1742 = vmatprep.subr.mxu0 %v1464
    %1743 = vmatpush1.msra.mxu0 %v1463
    %1744 = vmatprep.subr.mxu0 %v1468
    %1745 = vmatpush1.msra.mxu0 %v1467
    %1746 = vmatprep.subr.mxu0 %v1472
    %1747 = vmatpush1.msra.mxu0 %v1471
    %1748 = vmatprep.subr.mxu0 %v1476
    %1749 = vmatpush1.msra.mxu0 %v1475
    %1750 = vmatprep.subr.mxu0 %v1480
    %1751 = vmatpush1.msra.mxu0 %v1479
    %1752 = vmatprep.subr.mxu0 %v1484
    %1753 = vmatpush1.msra.mxu0 %v1483
    %1754 = vmatprep.subr.mxu0 %v1488
    %1755 = vmatpush1.msra.mxu0 %v1487
    %1756 = vmatprep.subr.mxu0 %v1492
    %1757 = vmatpush1.msra.mxu0 %v1491
    %1758 = vmatprep.subr.mxu0 %v1496
    %1759 = vmatpush1.msra.mxu0 %v1495
    %1760 = vmatprep.subr.mxu0 %v1500
    %1761 = vmatpush1.msra.mxu0 %v1499
    %1762 = vmatprep.subr.mxu0 %v1504
    %1763 = vmatpush1.msra.mxu0 %v1503
    %1764 = vmatprep.subr.mxu0 %v1508
    %1765 = vmatpush1.msra.mxu0 %v1507
    %1766 = vmatprep.subr.mxu0 %v1512
    %1767 = vmatpush1.msra.mxu0 %v1511
    %1768 = vmatprep.subr.mxu0 %v1516
    %1769 = vmatpush1.msra.mxu0 %v1515
    %1770 = vmatprep.subr.mxu0 %v1520
    %1771 = vmatpush1.msra.mxu0 %v1519
    %1772 = vmatprep.subr.mxu0 %v1524
    %1773 = vmatpush1.msra.mxu0 %v1523
    %1774 = vmatprep.subr.mxu0 %v1528
    %1775 = vmatpush1.msra.mxu0 %v1527
    %1776 = vmatprep.mubr.f32.mxu0 %v1277
    %1777 = vmatmul.mubr.f32.gmra.mrb[0].mxu0 %v1275
    %v1778 = vpop.f32.mrb[0].mxu0
    %v1779 = vadd.f32 %v1542, %v1778
    %v1780 = vpop.f32.mrb[0].mxu0
    %v1781 = vadd.f32 %v1546, %v1780
    %1782 = vmatprep.mubr.f32.mxu0 %v1283
    %1783 = vmatmul.mubr.f32.gmra.mrb[0].mxu0 %v1281
    %v1784 = vpop.f32.mrb[0].mxu0
    %v1785 = vadd.f32 %v1542, %v1784
    %v1786 = vpop.f32.mrb[0].mxu0
    %v1787 = vadd.f32 %v1546, %v1786
    %1788 = vmatprep.mubr.f32.mxu0 %v1289
    %1789 = vmatmul.mubr.f32.gmra.mrb[0].mxu0 %v1287
    %v1790 = vpop.f32.mrb[0].mxu0
    %v1791 = vadd.f32 %v1542, %v1790
    %v1792 = vpop.f32.mrb[0].mxu0
    %v1793 = vadd.f32 %v1546, %v1792
    %1794 = vmatprep.mubr.f32.mxu0 %v1295
    %1795 = vmatmul.mubr.f32.gmra.mrb[0].mxu0 %v1293
    %v1796 = vpop.f32.mrb[0].mxu0
    %v1797 = vadd.f32 %v1542, %v1796
    %v1798 = vpop.f32.mrb[0].mxu0
    %v1799 = vadd.f32 %v1546, %v1798
    %1800 = vmatprep.mubr.f32.mxu0 %v1301
    %1801 = vmatmul.mubr.f32.gmra.mrb[0].mxu0 %v1299
    %v1802 = vpop.f32.mrb[0].mxu0
    %v1803 = vadd.f32 %v1542, %v1802
    %v1804 = vpop.f32.mrb[0].mxu0
    %v1805 = vadd.f32 %v1546, %v1804
    %1806 = vmatprep.mubr.f32.mxu0 %v1307
    %1807 = vmatmul.mubr.f32.gmra.mrb[0].mxu0 %v1305
    %v1808 = vpop.f32.mrb[0].mxu0
    %v1809 = vadd.f32 %v1542, %v1808
    %v1810 = vpop.f32.mrb[0].mxu0
    %v1811 = vadd.f32 %v1546, %v1810
    %1812 = vmatprep.mubr.f32.mxu0 %v1313
    %1813 = vmatmul.mubr.f32.gmra.mrb[0].mxu0 %v1311
    %v1814 = vpop.f32.mrb[0].mxu0
    %v1815 = vadd.f32 %v1542, %v1814
    %v1816 = vpop.f32.mrb[0].mxu0
    %v1817 = vadd.f32 %v1546, %v1816
    %1818 = vmatprep.mubr.f32.mxu0 %v1319
    %1819 = vmatmul.mubr.f32.gmra.mrb[0].mxu0 %v1317
    %v1820 = vpop.f32.mrb[0].mxu0
    %v1821 = vadd.f32 %v1542, %v1820
    %v1822 = vpop.f32.mrb[0].mxu0
    %v1823 = vadd.f32 %v1546, %v1822
    %1824 = vmatprep.mubr.f32.mxu0 %v1325
    %1825 = vmatmul.mubr.f32.gmra.mrb[0].mxu0 %v1323
    %v1826 = vpop.f32.mrb[0].mxu0
    %v1827 = vadd.f32 %v1542, %v1826
    %v1828 = vpop.f32.mrb[0].mxu0
    %v1829 = vadd.f32 %v1546, %v1828
    %1830 = vmatprep.mubr.f32.mxu0 %v1331
    %1831 = vmatmul.mubr.f32.gmra.mrb[0].mxu0 %v1329
    %v1832 = vpop.f32.mrb[0].mxu0
    %v1833 = vadd.f32 %v1542, %v1832
    %v1834 = vpop.f32.mrb[0].mxu0
    %v1835 = vadd.f32 %v1546, %v1834
    %1836 = vmatprep.mubr.f32.mxu0 %v1337
    %1837 = vmatmul.mubr.f32.gmra.mrb[0].mxu0 %v1335
    %v1838 = vpop.f32.mrb[0].mxu0
    %v1839 = vadd.f32 %v1542, %v1838
    %v1840 = vpop.f32.mrb[0].mxu0
    %v1841 = vadd.f32 %v1546, %v1840
    %1842 = vmatprep.mubr.f32.mxu0 %v1343
    %1843 = vmatmul.mubr.f32.gmra.mrb[0].mxu0 %v1341
    %v1844 = vpop.f32.mrb[0].mxu0
    %v1845 = vadd.f32 %v1542, %v1844
    %v1846 = vpop.f32.mrb[0].mxu0
    %v1847 = vadd.f32 %v1546, %v1846
    %1848 = vmatprep.mubr.f32.mxu0 %v1349
    %1849 = vmatmul.mubr.f32.gmra.mrb[0].mxu0 %v1347
    %v1850 = vpop.f32.mrb[0].mxu0
    %v1851 = vadd.f32 %v1542, %v1850
    %v1852 = vpop.f32.mrb[0].mxu0
    %v1853 = vadd.f32 %v1546, %v1852
    %1854 = vmatprep.mubr.f32.mxu0 %v1355
    %1855 = vmatmul.mubr.f32.gmra.mrb[0].mxu0 %v1353
    %v1856 = vpop.f32.mrb[0].mxu0
    %v1857 = vadd.f32 %v1542, %v1856
    %v1858 = vpop.f32.mrb[0].mxu0
    %v1859 = vadd.f32 %v1546, %v1858
    %1860 = vmatprep.mubr.f32.mxu0 %v1361
    %1861 = vmatmul.mubr.f32.gmra.mrb[0].mxu0 %v1359
    %v1862 = vpop.f32.mrb[0].mxu0
    %v1863 = vadd.f32 %v1542, %v1862
    %v1864 = vpop.f32.mrb[0].mxu0
    %v1865 = vadd.f32 %v1546, %v1864
    %1866 = vmatprep.mubr.f32.mxu0 %v1367
    %1867 = vmatmul.mubr.f32.gmra.mrb[0].mxu0 %v1365
    %v1868 = vpop.f32.mrb[0].mxu0
    %v1869 = vadd.f32 %v1542, %v1868
    %v1870 = vpop.f32.mrb[0].mxu0
    %v1871 = vadd.f32 %v1546, %v1870
    %1872 = vdwg.mxu0
    %1873 = vst [vmem:[#allocation4] sm:$0xff] %v1618
    %1874 = vst [vmem:[#allocation4 + $0x8] sm:$0xff] %v1620
    %1875 = vst [vmem:[#allocation4 + $0x10] sm:$0xff] %v1779
    %vm1876 = vcmask 785408
    %1877 = vst.msk [vmem:[#allocation4 + $0x18] sm:$0xff] %vm1876, %v1781
    %1878 = vst [vmem:[#allocation4 + $0x20] sm:$0xff] %v1624
    %1879 = vst [vmem:[#allocation4 + $0x28] sm:$0xff] %v1626
    %1880 = vst [vmem:[#allocation4 + $0x30] sm:$0xff] %v1785
    %1881 = vst.msk [vmem:[#allocation4 + $0x38] sm:$0xff] %vm1876, %v1787
    %1882 = vst [vmem:[#allocation4 + $0x40] sm:$0xff] %v1630
    %1883 = vst [vmem:[#allocation4 + $0x48] sm:$0xff] %v1632
    %1884 = vst [vmem:[#allocation4 + $0x50] sm:$0xff] %v1791
    %1885 = vst.msk [vmem:[#allocation4 + $0x58] sm:$0xff] %vm1876, %v1793
    %1886 = vst [vmem:[#allocation4 + $0x60] sm:$0xff] %v1636
    %1887 = vst [vmem:[#allocation4 + $0x68] sm:$0xff] %v1638
    %1888 = vst [vmem:[#allocation4 + $0x70] sm:$0xff] %v1797
    %1889 = vst.msk [vmem:[#allocation4 + $0x78] sm:$0xff] %vm1876, %v1799
    %1890 = vst [vmem:[#allocation4 + $0x80] sm:$0xff] %v1642
    %1891 = vst [vmem:[#allocation4 + $0x88] sm:$0xff] %v1644
    %1892 = vst [vmem:[#allocation4 + $0x90] sm:$0xff] %v1803
    %1893 = vst.msk [vmem:[#allocation4 + $0x98] sm:$0xff] %vm1876, %v1805
    %1894 = vst [vmem:[#allocation4 + $0xa0] sm:$0xff] %v1648
    %1895 = vst [vmem:[#allocation4 + $0xa8] sm:$0xff] %v1650
    %1896 = vst [vmem:[#allocation4 + $0xb0] sm:$0xff] %v1809
    %1897 = vst.msk [vmem:[#allocation4 + $0xb8] sm:$0xff] %vm1876, %v1811
    %1898 = vst [vmem:[#allocation4 + $0xc0] sm:$0xff] %v1654
    %1899 = vst [vmem:[#allocation4 + $0xc8] sm:$0xff] %v1656
    %1900 = vst [vmem:[#allocation4 + $0xd0] sm:$0xff] %v1815
    %1901 = vst.msk [vmem:[#allocation4 + $0xd8] sm:$0xff] %vm1876, %v1817
    %1902 = vst [vmem:[#allocation4 + $0xe0] sm:$0xff] %v1660
    %1903 = vst [vmem:[#allocation4 + $0xe8] sm:$0xff] %v1662
    %1904 = vst [vmem:[#allocation4 + $0xf0] sm:$0xff] %v1821
    %1905 = vst.msk [vmem:[#allocation4 + $0xf8] sm:$0xff] %vm1876, %v1823
    %1906 = vst [vmem:[#allocation4 + $0x100] sm:$0xff] %v1666
    %1907 = vst [vmem:[#allocation4 + $0x108] sm:$0xff] %v1668
    %1908 = vst [vmem:[#allocation4 + $0x110] sm:$0xff] %v1827
    %1909 = vst.msk [vmem:[#allocation4 + $0x118] sm:$0xff] %vm1876, %v1829
    %1910 = vst [vmem:[#allocation4 + $0x120] sm:$0xff] %v1672
    %1911 = vst [vmem:[#allocation4 + $0x128] sm:$0xff] %v1674
    %1912 = vst [vmem:[#allocation4 + $0x130] sm:$0xff] %v1833
    %1913 = vst.msk [vmem:[#allocation4 + $0x138] sm:$0xff] %vm1876, %v1835
    %1914 = vst [vmem:[#allocation4 + $0x140] sm:$0xff] %v1678
    %1915 = vst [vmem:[#allocation4 + $0x148] sm:$0xff] %v1680
    %1916 = vst [vmem:[#allocation4 + $0x150] sm:$0xff] %v1839
    %1917 = vst.msk [vmem:[#allocation4 + $0x158] sm:$0xff] %vm1876, %v1841
    %1918 = vst [vmem:[#allocation4 + $0x160] sm:$0xff] %v1684
    %1919 = vst [vmem:[#allocation4 + $0x168] sm:$0xff] %v1686
    %1920 = vst [vmem:[#allocation4 + $0x170] sm:$0xff] %v1845
    %1921 = vst.msk [vmem:[#allocation4 + $0x178] sm:$0xff] %vm1876, %v1847
    %1922 = vst [vmem:[#allocation4 + $0x180] sm:$0xff] %v1690
    %1923 = vst [vmem:[#allocation4 + $0x188] sm:$0xff] %v1692
    %1924 = vst [vmem:[#allocation4 + $0x190] sm:$0xff] %v1851
    %1925 = vst.msk [vmem:[#allocation4 + $0x198] sm:$0xff] %vm1876, %v1853
    %1926 = vst [vmem:[#allocation4 + $0x1a0] sm:$0xff] %v1696
    %1927 = vst [vmem:[#allocation4 + $0x1a8] sm:$0xff] %v1698
    %1928 = vst [vmem:[#allocation4 + $0x1b0] sm:$0xff] %v1857
    %1929 = vst.msk [vmem:[#allocation4 + $0x1b8] sm:$0xff] %vm1876, %v1859
    %1930 = vst [vmem:[#allocation4 + $0x1c0] sm:$0xff] %v1702
    %1931 = vst [vmem:[#allocation4 + $0x1c8] sm:$0xff] %v1704
    %1932 = vst [vmem:[#allocation4 + $0x1d0] sm:$0xff] %v1863
    %1933 = vst.msk [vmem:[#allocation4 + $0x1d8] sm:$0xff] %vm1876, %v1865
    %1934 = vst [vmem:[#allocation4 + $0x1e0] sm:$0xff] %v1708
    %1935 = vst [vmem:[#allocation4 + $0x1e8] sm:$0xff] %v1710
    %1936 = vst [vmem:[#allocation4 + $0x1f0] sm:$0xff] %v1869
    %1937 = vst.msk [vmem:[#allocation4 + $0x1f8] sm:$0xff] %vm1876, %v1871
    // Predicated region
    $region62: #{recon_detection_forward.1} parent=1 // pred_check
      _
    $region63: #{recon_detection_forward.1} parent=1 // pred_check_branch
      %1939 = sbr.rel (0) target = $region65
    $region64: #{recon_detection_forward.1} parent=1 // pred_region
      %s1941 = ssub.s32 4096, 4096
      %1942 = vsyncadd [#allocation3], %s1941
      %s1943 = sshll.u32 [#allocation2], 4
      %s1944 = int_to_ptr.vmem [resolvable:$true] %s1943
      %1949 = dma.vmem_to_hbm [thread:$0]  %s1944, 4096, %s15, [#allocation3], 256, 256, 16
    $region65: #{recon_detection_forward.1} parent=1 // pred_fallthru
      _
    // Predicated region
    $region66: #{recon_detection_forward.1} parent=1 // pred_check
      _
    $region67: #{recon_detection_forward.1} parent=1 // pred_check_branch
      %1951 = sbr.rel (0) target = $region69
    $region68: #{recon_detection_forward.1} parent=1 // pred_region
      %s1953 = ssub.s32 8192, 8192
      %1954 = vsyncadd [#allocation5], %s1953
      %s1955 = sshll.u32 [#allocation4], 4
      %s1956 = int_to_ptr.vmem [resolvable:$true] %s1955
      %1961 = dma.vmem_to_hbm [thread:$0]  %s1956, 8192, %s16, [#allocation5], 512, 512, 32
    $region69: #{recon_detection_forward.1} parent=1 // pred_fallthru
      _
    // Predicated region
    $region70: #{recon_detection_forward.1} parent=1 // pred_check
      _
    $region71: #{recon_detection_forward.1} parent=1 // pred_check_branch
      %1963 = sbr.rel (0) target = $region73
    $region72: #{recon_detection_forward.1} parent=1 // pred_region
      %1964 = dma.done [#allocation3], 4096
    $region73: #{recon_detection_forward.1} parent=1 // pred_fallthru
      _
    // Predicated region
    $region74: #{recon_detection_forward.1} parent=1 // pred_check
      _
    $region75: #{recon_detection_forward.1} parent=1 // pred_check_branch
      %1966 = sbr.rel (0) target = $region77
    $region76: #{recon_detection_forward.1} parent=1 // pred_region
      %1967 = dma.done [#allocation5], 8192
    $region77: #{recon_detection_forward.1} parent=1 // pred_fallthru
      _
    %1968 = vsyncpa [#allocation3], 1
    %1969 = vsyncpa [#allocation5], 1

</llo_original>
